<compile_context>
chip_gen: v7x
topology: tpu7x:2x2x1
jax: 0.10.0
libtpu: 0.0.40
codegen_flags: <defaults>
</compile_context>

<pallas_src>
import numpy as np
import jax
import jax.numpy as jnp
from jax import lax
from jax.experimental import pallas as pl
from jax.experimental.pallas import tpu as pltpu

# ---- model hyper-parameters (fc = nn.Linear(64, 64) forces hidden_dim == 64) ----
DIN = 32       # input_dim
HID = 64       # hidden_dim
NLAYERS = 2    # layer_dim
OUT = 64       # output_dim
BATCH = 2
SEQ = 8
BP = 8         # batch padded to the f32 sublane tile (8)


# ------------------------------ Pallas kernel ------------------------------ #
def _cell(gates, c):
    """LSTM cell elementwise update. gates: (BP, 4H) pre-activations, i|f|g|o."""
    H = HID
    sg = jax.nn.sigmoid(gates)              # one whole-slab EUP push for i, f, o
    i = sg[:, 0 * H:1 * H]
    f = sg[:, 1 * H:2 * H]
    o = sg[:, 3 * H:4 * H]
    g = jnp.tanh(gates[:, 2 * H:3 * H])
    c_new = f * c + i * g
    h_new = o * jnp.tanh(c_new)
    return h_new, c_new


def dkt_f_kernel(x_ref,                         # (T*BP, DIN) time-major, batch minor
                 wi0_ref, b0_ref,               # layer-0 input proj: (DIN,4H),(1,4H)
                 wcat_ref, b1_ref,              # fused recurrent W: (2H,8H),(1,4H)
                 w1_ref, b1m_ref,               # fc folded into out[0]: (H,128),(1,128)
                 w2_ref, b2m_ref,               # out[3]: (128,H),(1,H)
                 wlin_ref, blin_ref,            # Linear: (H,OUT),(1,OUT)
                 o_ref):                        # output: (T*BP, OUT)
    T, B, H = SEQ, BP, HID
    f32 = jnp.float32

    # hoisted layer-0 input projection (+ bias): one dense matmul for all steps,
    # kept as a value (16 vregs) and consumed as full-tile (BP,4H) slices.
    gx0 = jnp.dot(x_ref[...], wi0_ref[...], preferred_element_type=f32) + b0_ref[...]

    h0 = jnp.zeros((B, H), f32)
    c0 = jnp.zeros((B, H), f32)
    h1 = jnp.zeros((B, H), f32)
    c1 = jnp.zeros((B, H), f32)
    b1row = b1_ref[...]
    seq1 = []

    # wavefront step 0: layer-0 only (h0_{-1} = 0 -> recurrent term vanishes, no dot)
    h0, c0 = _cell(gx0[0:B, :], c0)

    # wavefront steps 1..T-1: ONE fused dot feeds layer-0 step s and layer-1 step s-1
    for s in range(1, T):                                        # static -> unrolled
        u = jnp.concatenate([h0, h1], axis=1)                    # [h0_{s-1} || h1_{s-2}]
        g_all = jnp.dot(u, wcat_ref[...], preferred_element_type=f32)   # (BP, 8H)
        h1, c1 = _cell(g_all[:, 4 * H:] + b1row, c1)             # layer-1, time s-1
        seq1.append(h1)
        h0, c0 = _cell(gx0[s * B:(s + 1) * B, :] + g_all[:, :4 * H], c0)  # layer-0, time s

    # final wavefront step: layer-1 step T-1 only (use just its weight block)
    u = jnp.concatenate([h0, h1], axis=1)
    g1 = jnp.dot(u, wcat_ref[:, pl.ds(4 * H, 4 * H)],
                 preferred_element_type=f32) + b1row
    h1, c1 = _cell(g1, c1)
    seq1.append(h1)

    # TODO(synk): nn.LSTM inter-layer dropout=0.1 is training-only -> identity here.

    rnn = jnp.concatenate(seq1, axis=0)                          # (T*BP, H), vreg-built

    # ---- head: (fc folded into w1) -> tanh -> Linear -> tanh ----
    out = jnp.tanh(jnp.dot(rnn, w1_ref[...], preferred_element_type=f32) + b1m_ref[...])
    out = jnp.tanh(jnp.dot(out, w2_ref[...], preferred_element_type=f32) + b2m_ref[...])

    # + h0[-1] (layer-1 final hidden) broadcast over time, value-level (no scratch)
    out = out + jnp.concatenate([h1] * T, axis=0)

    # final Linear + sigmoid, single store of the whole (T*BP, OUT) slab
    z = jnp.dot(out, wlin_ref[...], preferred_element_type=f32) + blin_ref[...]
    o_ref[...] = jax.nn.sigmoid(z)


# ------------------------------ wrapper ------------------------------ #
def prepare_params(params):
    """Fold fc into the first MLP layer and build the fused wavefront weight."""
    (wi0, wh0, b0, wi1, wh1, b1, wfc, bfc, w1, b1m, w2, b2m, wlin, blin) = params
    w1f = wfc @ w1                       # (H, 128)
    b1f = bfc @ w1 + b1m                 # (1, 128)
    # wcat = [[wh0, wi1], [0, wh1]] so [h0 || h1] @ wcat = [h0@wh0 || h0@wi1 + h1@wh1]
    wcat = jnp.concatenate(
        [jnp.concatenate([wh0, wi1], axis=1),
         jnp.concatenate([jnp.zeros((HID, 4 * HID), jnp.float32), wh1], axis=1)],
        axis=0)                          # (2H, 8H)
    return (wi0, b0, wcat, b1, w1f, b1f, w2, b2m, wlin, blin)


@jax.jit
def dkt_f_forward(x, kparams):
    """x: (B, T, DIN) batch-first (PyTorch convention). Returns (B, T, OUT)."""
    B, T, _ = x.shape
    # time-major, batch-minor 2-D slab with batch padded to the 8-row sublane tile
    xt = jnp.transpose(x, (1, 0, 2)).astype(jnp.float32)         # (T, B, DIN)
    xt = jnp.pad(xt, ((0, 0), (0, BP - B), (0, 0)))              # (T, BP, DIN)
    x2 = xt.reshape(T * BP, DIN)

    n_in = 1 + len(kparams)
    out_2d = pl.pallas_call(
        dkt_f_kernel,
        out_shape=jax.ShapeDtypeStruct((T * BP, OUT), jnp.float32),
        in_specs=[pl.BlockSpec(memory_space=pltpu.MemorySpace.VMEM)] * n_in,
        out_specs=pl.BlockSpec(memory_space=pltpu.MemorySpace.VMEM),
    )(x2, *kparams)

    out = out_2d.reshape(T, BP, OUT)[:, :B, :]                   # drop padded rows
    return jnp.transpose(out, (1, 0, 2))                         # -> (B, T, OUT)


# ------------------------------ parameters ------------------------------ #
def init_params(key):
    def u(k, shape, scale):
        return jax.random.uniform(k, shape, jnp.float32, -scale, scale)

    ks = jax.random.split(key, 16)
    kH = 1.0 / np.sqrt(HID)

    # PyTorch layout: W_ih (4H, in), W_hh (4H, H), biases (4H,); gate order i|f|g|o.
    W_ih0 = u(ks[0], (4 * HID, DIN), kH)
    W_hh0 = u(ks[1], (4 * HID, HID), kH)
    b0 = u(ks[2], (4 * HID,), kH) + u(ks[3], (4 * HID,), kH)      # b_ih + b_hh
    W_ih1 = u(ks[4], (4 * HID, HID), kH)
    W_hh1 = u(ks[5], (4 * HID, HID), kH)
    b1 = u(ks[6], (4 * HID,), kH) + u(ks[7], (4 * HID,), kH)

    # fused kernel layout (x @ W form): (in, 4H) with i|f|g|o blocks along lanes
    wi0 = W_ih0.T
    wh0 = W_hh0.T
    b0k = b0.reshape(1, 4 * HID)
    wi1 = W_ih1.T
    wh1 = W_hh1.T
    b1k = b1.reshape(1, 4 * HID)

    kfc = 1.0 / np.sqrt(64)
    wfc = u(ks[8], (64, 64), kfc).T                               # (H, H)
    bfc = u(ks[9], (64,), kfc).reshape(1, 64)
    k1 = 1.0 / np.sqrt(64)
    w1 = u(ks[10], (128, 64), k1).T                               # (64, 128)
    b1m = u(ks[11], (128,), k1).reshape(1, 128)
    k2 = 1.0 / np.sqrt(128)
    w2 = u(ks[12], (64, 128), k2).T                               # (128, 64)
    b2m = u(ks[13], (64,), k2).reshape(1, 64)
    kl = 1.0 / np.sqrt(64)
    wlin = u(ks[14], (OUT, 64), kl).T                             # (64, OUT)
    blin = u(ks[15], (OUT,), kl).reshape(1, OUT)

    return (wi0, wh0, b0k, wi1, wh1, b1k, wfc, bfc, w1, b1m, w2, b2m, wlin, blin)


# ------------------------------ pure-JAX reference ------------------------------ #
def reference(x, params):
    (wi0, wh0, b0, wi1, wh1, b1, wfc, bfc, w1, b1m, w2, b2m, wlin, blin) = params
    B, T, _ = x.shape
    H = HID

    def lstm(xs, wi, wh, b):                                      # xs: (T, B, D)
        def step(carry, x_t):
            h, c = carry
            gates = x_t @ wi + h @ wh + b                         # (B, 4H)
            i = jax.nn.sigmoid(gates[:, 0 * H:1 * H])
            f = jax.nn.sigmoid(gates[:, 1 * H:2 * H])
            g = jnp.tanh(gates[:, 2 * H:3 * H])
            o = jax.nn.sigmoid(gates[:, 3 * H:4 * H])
            c = f * c + i * g
            h = o * jnp.tanh(c)
            return (h, c), h
        init = (jnp.zeros((B, H), jnp.float32), jnp.zeros((B, H), jnp.float32))
        (h, _), hs = lax.scan(step, init, xs)
        return hs, h

    xt = jnp.transpose(x, (1, 0, 2))
    seq0, _ = lstm(xt, wi0, wh0, b0)
    seq1, h_last = lstm(seq0, wi1, wh1, b1)
    rnn = jnp.transpose(seq1, (1, 0, 2))                          # (B, T, H)
    out = rnn @ wfc + bfc
    out = jnp.tanh(out @ w1 + b1m)
    out = jnp.tanh(out @ w2 + b2m)
    out = out + h_last[:, None, :]
    out = out @ wlin + blin
    return jax.nn.sigmoid(out)


# ------------------------------ main ------------------------------ #
if __name__ == "__main__":
    key = jax.random.PRNGKey(0)
    kx, kp = jax.random.split(key)
    x = jax.random.normal(kx, (BATCH, SEQ, DIN), jnp.float32)
    params = init_params(kp)
    kparams = prepare_params(params)

    out = dkt_f_forward(x, kparams)
    out = jax.block_until_ready(out)

    ref = jax.block_until_ready(reference(x, params))
    assert out.shape == (BATCH, SEQ, OUT), out.shape
    assert np.allclose(np.asarray(out), np.asarray(ref), rtol=1e-3, atol=3e-3), (
        float(np.max(np.abs(np.asarray(out) - np.asarray(ref)))))

    print("KERNEL_OK")
</pallas_src>

<mosaic_0001>
module attributes {stable_mosaic.version = 11 : i64} {
  func.func @dkt_f_kernel(%arg0: memref<64x32xf32, #tpu.memory_space<vmem>>, %arg1: memref<32x256xf32, #tpu.memory_space<vmem>>, %arg2: memref<1x256xf32, #tpu.memory_space<vmem>>, %arg3: memref<128x512xf32, #tpu.memory_space<vmem>>, %arg4: memref<1x256xf32, #tpu.memory_space<vmem>>, %arg5: memref<64x128xf32, #tpu.memory_space<vmem>>, %arg6: memref<1x128xf32, #tpu.memory_space<vmem>>, %arg7: memref<128x64xf32, #tpu.memory_space<vmem>>, %arg8: memref<1x64xf32, #tpu.memory_space<vmem>>, %arg9: memref<64x64xf32, #tpu.memory_space<vmem>>, %arg10: memref<1x64xf32, #tpu.memory_space<vmem>>, %arg11: memref<64x64xf32, #tpu.memory_space<vmem>>) attributes {dimension_semantics = [], scalar_prefetch = 0 : i64, scratch_operands = 0 : i64, tpu.core_type = #tpu.core_type<tc>} {
    %c0 = arith.constant 0 : index
    %c0_0 = arith.constant 0 : index
    %0 = vector.load %arg0[%c0, %c0_0] : memref<64x32xf32, #tpu.memory_space<vmem>>, vector<64x32xf32>
    %c0_1 = arith.constant 0 : index
    %c0_2 = arith.constant 0 : index
    %1 = vector.load %arg1[%c0_1, %c0_2] : memref<32x256xf32, #tpu.memory_space<vmem>>, vector<32x256xf32>
    %cst = arith.constant dense<0.000000e+00> : vector<64x256xf32>
    %2 = tpu.matmul %0, %1, %cst {dimension_numbers = #tpu.dot_dimension_numbers<[1], [0], [0], [1], [0, 0, 1, 1], [], []>} : vector<64x32xf32>, vector<32x256xf32>, vector<64x256xf32> -> vector<64x256xf32>
    %c0_3 = arith.constant 0 : index
    %c0_4 = arith.constant 0 : index
    %3 = vector.load %arg2[%c0_3, %c0_4] : memref<1x256xf32, #tpu.memory_space<vmem>>, vector<1x256xf32>
    %4 = vector.broadcast %3 : vector<1x256xf32> to vector<64x256xf32>
    %5 = arith.addf %2, %4 : vector<64x256xf32>
    %cst_5 = arith.constant 0.000000e+00 : f32
    %6 = vector.broadcast %cst_5 : f32 to vector<8x64xf32>
    %cst_6 = arith.constant 0.000000e+00 : f32
    %7 = vector.broadcast %cst_6 : f32 to vector<8x64xf32>
    %cst_7 = arith.constant 0.000000e+00 : f32
    %8 = vector.broadcast %cst_7 : f32 to vector<8x64xf32>
    %c0_8 = arith.constant 0 : index
    %c0_9 = arith.constant 0 : index
    %9 = vector.load %arg4[%c0_8, %c0_9] : memref<1x256xf32, #tpu.memory_space<vmem>>, vector<1x256xf32>
    %10 = vector.extract_strided_slice %5 {offsets = [0, 0], sizes = [8, 256], strides = [1, 1]} : vector<64x256xf32> to vector<8x256xf32>
    %11 = arith.negf %10 : vector<8x256xf32>
    %12 = math.exp %11 : vector<8x256xf32>
    %cst_10 = arith.constant 1.000000e+00 : f32
    %13 = vector.broadcast %cst_10 : f32 to vector<8x256xf32>
    %14 = arith.addf %13, %12 : vector<8x256xf32>
    %15 = arith.divf %13, %14 : vector<8x256xf32>
    %16 = vector.extract_strided_slice %15 {offsets = [0, 0], sizes = [8, 64], strides = [1, 1]} : vector<8x256xf32> to vector<8x64xf32>
    %17 = vector.extract_strided_slice %15 {offsets = [0, 64], sizes = [8, 64], strides = [1, 1]} : vector<8x256xf32> to vector<8x64xf32>
    %18 = vector.extract_strided_slice %15 {offsets = [0, 192], sizes = [8, 64], strides = [1, 1]} : vector<8x256xf32> to vector<8x64xf32>
    %19 = vector.extract_strided_slice %10 {offsets = [0, 128], sizes = [8, 64], strides = [1, 1]} : vector<8x256xf32> to vector<8x64xf32>
    %20 = math.tanh %19 : vector<8x64xf32>
    %21 = arith.mulf %17, %6 : vector<8x64xf32>
    %22 = arith.mulf %16, %20 : vector<8x64xf32>
    %23 = arith.addf %21, %22 : vector<8x64xf32>
    %24 = math.tanh %23 : vector<8x64xf32>
    %25 = arith.mulf %18, %24 : vector<8x64xf32>
    %26 = tpu.concatenate %25, %7 in 1 : vector<8x64xf32>, vector<8x64xf32> -> vector<8x128xf32>
    %c0_11 = arith.constant 0 : index
    %c0_12 = arith.constant 0 : index
    %27 = vector.load %arg3[%c0_11, %c0_12] : memref<128x512xf32, #tpu.memory_space<vmem>>, vector<128x512xf32>
    %cst_13 = arith.constant dense<0.000000e+00> : vector<8x512xf32>
    %28 = tpu.matmul %26, %27, %cst_13 {dimension_numbers = #tpu.dot_dimension_numbers<[1], [0], [0], [1], [0, 0, 1, 1], [], []>} : vector<8x128xf32>, vector<128x512xf32>, vector<8x512xf32> -> vector<8x512xf32>
    %29 = vector.extract_strided_slice %28 {offsets = [0, 256], sizes = [8, 256], strides = [1, 1]} : vector<8x512xf32> to vector<8x256xf32>
    %30 = vector.broadcast %9 : vector<1x256xf32> to vector<8x256xf32>
    %31 = arith.addf %29, %30 : vector<8x256xf32>
    %32 = arith.negf %31 : vector<8x256xf32>
    %33 = math.exp %32 : vector<8x256xf32>
    %cst_14 = arith.constant 1.000000e+00 : f32
    %34 = vector.broadcast %cst_14 : f32 to vector<8x256xf32>
    %35 = arith.addf %34, %33 : vector<8x256xf32>
    %36 = arith.divf %34, %35 : vector<8x256xf32>
    %37 = vector.extract_strided_slice %36 {offsets = [0, 0], sizes = [8, 64], strides = [1, 1]} : vector<8x256xf32> to vector<8x64xf32>
    %38 = vector.extract_strided_slice %36 {offsets = [0, 64], sizes = [8, 64], strides = [1, 1]} : vector<8x256xf32> to vector<8x64xf32>
    %39 = vector.extract_strided_slice %36 {offsets = [0, 192], sizes = [8, 64], strides = [1, 1]} : vector<8x256xf32> to vector<8x64xf32>
    %40 = vector.extract_strided_slice %31 {offsets = [0, 128], sizes = [8, 64], strides = [1, 1]} : vector<8x256xf32> to vector<8x64xf32>
    %41 = math.tanh %40 : vector<8x64xf32>
    %42 = arith.mulf %38, %8 : vector<8x64xf32>
    %43 = arith.mulf %37, %41 : vector<8x64xf32>
    %44 = arith.addf %42, %43 : vector<8x64xf32>
    %45 = math.tanh %44 : vector<8x64xf32>
    %46 = arith.mulf %39, %45 : vector<8x64xf32>
    %47 = vector.extract_strided_slice %5 {offsets = [8, 0], sizes = [8, 256], strides = [1, 1]} : vector<64x256xf32> to vector<8x256xf32>
    %48 = vector.extract_strided_slice %28 {offsets = [0, 0], sizes = [8, 256], strides = [1, 1]} : vector<8x512xf32> to vector<8x256xf32>
    %49 = arith.addf %47, %48 : vector<8x256xf32>
    %50 = arith.negf %49 : vector<8x256xf32>
    %51 = math.exp %50 : vector<8x256xf32>
    %cst_15 = arith.constant 1.000000e+00 : f32
    %52 = vector.broadcast %cst_15 : f32 to vector<8x256xf32>
    %53 = arith.addf %52, %51 : vector<8x256xf32>
    %54 = arith.divf %52, %53 : vector<8x256xf32>
    %55 = vector.extract_strided_slice %54 {offsets = [0, 0], sizes = [8, 64], strides = [1, 1]} : vector<8x256xf32> to vector<8x64xf32>
    %56 = vector.extract_strided_slice %54 {offsets = [0, 64], sizes = [8, 64], strides = [1, 1]} : vector<8x256xf32> to vector<8x64xf32>
    %57 = vector.extract_strided_slice %54 {offsets = [0, 192], sizes = [8, 64], strides = [1, 1]} : vector<8x256xf32> to vector<8x64xf32>
    %58 = vector.extract_strided_slice %49 {offsets = [0, 128], sizes = [8, 64], strides = [1, 1]} : vector<8x256xf32> to vector<8x64xf32>
    %59 = math.tanh %58 : vector<8x64xf32>
    %60 = arith.mulf %56, %23 : vector<8x64xf32>
    %61 = arith.mulf %55, %59 : vector<8x64xf32>
    %62 = arith.addf %60, %61 : vector<8x64xf32>
    %63 = math.tanh %62 : vector<8x64xf32>
    %64 = arith.mulf %57, %63 : vector<8x64xf32>
    %65 = tpu.concatenate %64, %46 in 1 : vector<8x64xf32>, vector<8x64xf32> -> vector<8x128xf32>
    %c0_16 = arith.constant 0 : index
    %c0_17 = arith.constant 0 : index
    %66 = vector.load %arg3[%c0_16, %c0_17] : memref<128x512xf32, #tpu.memory_space<vmem>>, vector<128x512xf32>
    %cst_18 = arith.constant dense<0.000000e+00> : vector<8x512xf32>
    %67 = tpu.matmul %65, %66, %cst_18 {dimension_numbers = #tpu.dot_dimension_numbers<[1], [0], [0], [1], [0, 0, 1, 1], [], []>} : vector<8x128xf32>, vector<128x512xf32>, vector<8x512xf32> -> vector<8x512xf32>
    %68 = vector.extract_strided_slice %67 {offsets = [0, 256], sizes = [8, 256], strides = [1, 1]} : vector<8x512xf32> to vector<8x256xf32>
    %69 = vector.broadcast %9 : vector<1x256xf32> to vector<8x256xf32>
    %70 = arith.addf %68, %69 : vector<8x256xf32>
    %71 = arith.negf %70 : vector<8x256xf32>
    %72 = math.exp %71 : vector<8x256xf32>
    %cst_19 = arith.constant 1.000000e+00 : f32
    %73 = vector.broadcast %cst_19 : f32 to vector<8x256xf32>
    %74 = arith.addf %73, %72 : vector<8x256xf32>
    %75 = arith.divf %73, %74 : vector<8x256xf32>
    %76 = vector.extract_strided_slice %75 {offsets = [0, 0], sizes = [8, 64], strides = [1, 1]} : vector<8x256xf32> to vector<8x64xf32>
    %77 = vector.extract_strided_slice %75 {offsets = [0, 64], sizes = [8, 64], strides = [1, 1]} : vector<8x256xf32> to vector<8x64xf32>
    %78 = vector.extract_strided_slice %75 {offsets = [0, 192], sizes = [8, 64], strides = [1, 1]} : vector<8x256xf32> to vector<8x64xf32>
    %79 = vector.extract_strided_slice %70 {offsets = [0, 128], sizes = [8, 64], strides = [1, 1]} : vector<8x256xf32> to vector<8x64xf32>
    %80 = math.tanh %79 : vector<8x64xf32>
    %81 = arith.mulf %77, %44 : vector<8x64xf32>
    %82 = arith.mulf %76, %80 : vector<8x64xf32>
    %83 = arith.addf %81, %82 : vector<8x64xf32>
    %84 = math.tanh %83 : vector<8x64xf32>
    %85 = arith.mulf %78, %84 : vector<8x64xf32>
    %86 = vector.extract_strided_slice %5 {offsets = [16, 0], sizes = [8, 256], strides = [1, 1]} : vector<64x256xf32> to vector<8x256xf32>
    %87 = vector.extract_strided_slice %67 {offsets = [0, 0], sizes = [8, 256], strides = [1, 1]} : vector<8x512xf32> to vector<8x256xf32>
    %88 = arith.addf %86, %87 : vector<8x256xf32>
    %89 = arith.negf %88 : vector<8x256xf32>
    %90 = math.exp %89 : vector<8x256xf32>
    %cst_20 = arith.constant 1.000000e+00 : f32
    %91 = vector.broadcast %cst_20 : f32 to vector<8x256xf32>
    %92 = arith.addf %91, %90 : vector<8x256xf32>
    %93 = arith.divf %91, %92 : vector<8x256xf32>
    %94 = vector.extract_strided_slice %93 {offsets = [0, 0], sizes = [8, 64], strides = [1, 1]} : vector<8x256xf32> to vector<8x64xf32>
    %95 = vector.extract_strided_slice %93 {offsets = [0, 64], sizes = [8, 64], strides = [1, 1]} : vector<8x256xf32> to vector<8x64xf32>
    %96 = vector.extract_strided_slice %93 {offsets = [0, 192], sizes = [8, 64], strides = [1, 1]} : vector<8x256xf32> to vector<8x64xf32>
    %97 = vector.extract_strided_slice %88 {offsets = [0, 128], sizes = [8, 64], strides = [1, 1]} : vector<8x256xf32> to vector<8x64xf32>
    %98 = math.tanh %97 : vector<8x64xf32>
    %99 = arith.mulf %95, %62 : vector<8x64xf32>
    %100 = arith.mulf %94, %98 : vector<8x64xf32>
    %101 = arith.addf %99, %100 : vector<8x64xf32>
    %102 = math.tanh %101 : vector<8x64xf32>
    %103 = arith.mulf %96, %102 : vector<8x64xf32>
    %104 = tpu.concatenate %103, %85 in 1 : vector<8x64xf32>, vector<8x64xf32> -> vector<8x128xf32>
    %c0_21 = arith.constant 0 : index
    %c0_22 = arith.constant 0 : index
    %105 = vector.load %arg3[%c0_21, %c0_22] : memref<128x512xf32, #tpu.memory_space<vmem>>, vector<128x512xf32>
    %cst_23 = arith.constant dense<0.000000e+00> : vector<8x512xf32>
    %106 = tpu.matmul %104, %105, %cst_23 {dimension_numbers = #tpu.dot_dimension_numbers<[1], [0], [0], [1], [0, 0, 1, 1], [], []>} : vector<8x128xf32>, vector<128x512xf32>, vector<8x512xf32> -> vector<8x512xf32>
    %107 = vector.extract_strided_slice %106 {offsets = [0, 256], sizes = [8, 256], strides = [1, 1]} : vector<8x512xf32> to vector<8x256xf32>
    %108 = vector.broadcast %9 : vector<1x256xf32> to vector<8x256xf32>
    %109 = arith.addf %107, %108 : vector<8x256xf32>
    %110 = arith.negf %109 : vector<8x256xf32>
    %111 = math.exp %110 : vector<8x256xf32>
    %cst_24 = arith.constant 1.000000e+00 : f32
    %112 = vector.broadcast %cst_24 : f32 to vector<8x256xf32>
    %113 = arith.addf %112, %111 : vector<8x256xf32>
    %114 = arith.divf %112, %113 : vector<8x256xf32>
    %115 = vector.extract_strided_slice %114 {offsets = [0, 0], sizes = [8, 64], strides = [1, 1]} : vector<8x256xf32> to vector<8x64xf32>
    %116 = vector.extract_strided_slice %114 {offsets = [0, 64], sizes = [8, 64], strides = [1, 1]} : vector<8x256xf32> to vector<8x64xf32>
    %117 = vector.extract_strided_slice %114 {offsets = [0, 192], sizes = [8, 64], strides = [1, 1]} : vector<8x256xf32> to vector<8x64xf32>
    %118 = vector.extract_strided_slice %109 {offsets = [0, 128], sizes = [8, 64], strides = [1, 1]} : vector<8x256xf32> to vector<8x64xf32>
    %119 = math.tanh %118 : vector<8x64xf32>
    %120 = arith.mulf %116, %83 : vector<8x64xf32>
    %121 = arith.mulf %115, %119 : vector<8x64xf32>
    %122 = arith.addf %120, %121 : vector<8x64xf32>
    %123 = math.tanh %122 : vector<8x64xf32>
    %124 = arith.mulf %117, %123 : vector<8x64xf32>
    %125 = vector.extract_strided_slice %5 {offsets = [24, 0], sizes = [8, 256], strides = [1, 1]} : vector<64x256xf32> to vector<8x256xf32>
    %126 = vector.extract_strided_slice %106 {offsets = [0, 0], sizes = [8, 256], strides = [1, 1]} : vector<8x512xf32> to vector<8x256xf32>
    %127 = arith.addf %125, %126 : vector<8x256xf32>
    %128 = arith.negf %127 : vector<8x256xf32>
    %129 = math.exp %128 : vector<8x256xf32>
    %cst_25 = arith.constant 1.000000e+00 : f32
    %130 = vector.broadcast %cst_25 : f32 to vector<8x256xf32>
    %131 = arith.addf %130, %129 : vector<8x256xf32>
    %132 = arith.divf %130, %131 : vector<8x256xf32>
    %133 = vector.extract_strided_slice %132 {offsets = [0, 0], sizes = [8, 64], strides = [1, 1]} : vector<8x256xf32> to vector<8x64xf32>
    %134 = vector.extract_strided_slice %132 {offsets = [0, 64], sizes = [8, 64], strides = [1, 1]} : vector<8x256xf32> to vector<8x64xf32>
    %135 = vector.extract_strided_slice %132 {offsets = [0, 192], sizes = [8, 64], strides = [1, 1]} : vector<8x256xf32> to vector<8x64xf32>
    %136 = vector.extract_strided_slice %127 {offsets = [0, 128], sizes = [8, 64], strides = [1, 1]} : vector<8x256xf32> to vector<8x64xf32>
    %137 = math.tanh %136 : vector<8x64xf32>
    %138 = arith.mulf %134, %101 : vector<8x64xf32>
    %139 = arith.mulf %133, %137 : vector<8x64xf32>
    %140 = arith.addf %138, %139 : vector<8x64xf32>
    %141 = math.tanh %140 : vector<8x64xf32>
    %142 = arith.mulf %135, %141 : vector<8x64xf32>
    %143 = tpu.concatenate %142, %124 in 1 : vector<8x64xf32>, vector<8x64xf32> -> vector<8x128xf32>
    %c0_26 = arith.constant 0 : index
    %c0_27 = arith.constant 0 : index
    %144 = vector.load %arg3[%c0_26, %c0_27] : memref<128x512xf32, #tpu.memory_space<vmem>>, vector<128x512xf32>
    %cst_28 = arith.constant dense<0.000000e+00> : vector<8x512xf32>
    %145 = tpu.matmul %143, %144, %cst_28 {dimension_numbers = #tpu.dot_dimension_numbers<[1], [0], [0], [1], [0, 0, 1, 1], [], []>} : vector<8x128xf32>, vector<128x512xf32>, vector<8x512xf32> -> vector<8x512xf32>
    %146 = vector.extract_strided_slice %145 {offsets = [0, 256], sizes = [8, 256], strides = [1, 1]} : vector<8x512xf32> to vector<8x256xf32>
    %147 = vector.broadcast %9 : vector<1x256xf32> to vector<8x256xf32>
    %148 = arith.addf %146, %147 : vector<8x256xf32>
    %149 = arith.negf %148 : vector<8x256xf32>
    %150 = math.exp %149 : vector<8x256xf32>
    %cst_29 = arith.constant 1.000000e+00 : f32
    %151 = vector.broadcast %cst_29 : f32 to vector<8x256xf32>
    %152 = arith.addf %151, %150 : vector<8x256xf32>
    %153 = arith.divf %151, %152 : vector<8x256xf32>
    %154 = vector.extract_strided_slice %153 {offsets = [0, 0], sizes = [8, 64], strides = [1, 1]} : vector<8x256xf32> to vector<8x64xf32>
    %155 = vector.extract_strided_slice %153 {offsets = [0, 64], sizes = [8, 64], strides = [1, 1]} : vector<8x256xf32> to vector<8x64xf32>
    %156 = vector.extract_strided_slice %153 {offsets = [0, 192], sizes = [8, 64], strides = [1, 1]} : vector<8x256xf32> to vector<8x64xf32>
    %157 = vector.extract_strided_slice %148 {offsets = [0, 128], sizes = [8, 64], strides = [1, 1]} : vector<8x256xf32> to vector<8x64xf32>
    %158 = math.tanh %157 : vector<8x64xf32>
    %159 = arith.mulf %155, %122 : vector<8x64xf32>
    %160 = arith.mulf %154, %158 : vector<8x64xf32>
    %161 = arith.addf %159, %160 : vector<8x64xf32>
    %162 = math.tanh %161 : vector<8x64xf32>
    %163 = arith.mulf %156, %162 : vector<8x64xf32>
    %164 = vector.extract_strided_slice %5 {offsets = [32, 0], sizes = [8, 256], strides = [1, 1]} : vector<64x256xf32> to vector<8x256xf32>
    %165 = vector.extract_strided_slice %145 {offsets = [0, 0], sizes = [8, 256], strides = [1, 1]} : vector<8x512xf32> to vector<8x256xf32>
    %166 = arith.addf %164, %165 : vector<8x256xf32>
    %167 = arith.negf %166 : vector<8x256xf32>
    %168 = math.exp %167 : vector<8x256xf32>
    %cst_30 = arith.constant 1.000000e+00 : f32
    %169 = vector.broadcast %cst_30 : f32 to vector<8x256xf32>
    %170 = arith.addf %169, %168 : vector<8x256xf32>
    %171 = arith.divf %169, %170 : vector<8x256xf32>
    %172 = vector.extract_strided_slice %171 {offsets = [0, 0], sizes = [8, 64], strides = [1, 1]} : vector<8x256xf32> to vector<8x64xf32>
    %173 = vector.extract_strided_slice %171 {offsets = [0, 64], sizes = [8, 64], strides = [1, 1]} : vector<8x256xf32> to vector<8x64xf32>
    %174 = vector.extract_strided_slice %171 {offsets = [0, 192], sizes = [8, 64], strides = [1, 1]} : vector<8x256xf32> to vector<8x64xf32>
    %175 = vector.extract_strided_slice %166 {offsets = [0, 128], sizes = [8, 64], strides = [1, 1]} : vector<8x256xf32> to vector<8x64xf32>
    %176 = math.tanh %175 : vector<8x64xf32>
    %177 = arith.mulf %173, %140 : vector<8x64xf32>
    %178 = arith.mulf %172, %176 : vector<8x64xf32>
    %179 = arith.addf %177, %178 : vector<8x64xf32>
    %180 = math.tanh %179 : vector<8x64xf32>
    %181 = arith.mulf %174, %180 : vector<8x64xf32>
    %182 = tpu.concatenate %181, %163 in 1 : vector<8x64xf32>, vector<8x64xf32> -> vector<8x128xf32>
    %c0_31 = arith.constant 0 : index
    %c0_32 = arith.constant 0 : index
    %183 = vector.load %arg3[%c0_31, %c0_32] : memref<128x512xf32, #tpu.memory_space<vmem>>, vector<128x512xf32>
    %cst_33 = arith.constant dense<0.000000e+00> : vector<8x512xf32>
    %184 = tpu.matmul %182, %183, %cst_33 {dimension_numbers = #tpu.dot_dimension_numbers<[1], [0], [0], [1], [0, 0, 1, 1], [], []>} : vector<8x128xf32>, vector<128x512xf32>, vector<8x512xf32> -> vector<8x512xf32>
    %185 = vector.extract_strided_slice %184 {offsets = [0, 256], sizes = [8, 256], strides = [1, 1]} : vector<8x512xf32> to vector<8x256xf32>
    %186 = vector.broadcast %9 : vector<1x256xf32> to vector<8x256xf32>
    %187 = arith.addf %185, %186 : vector<8x256xf32>
    %188 = arith.negf %187 : vector<8x256xf32>
    %189 = math.exp %188 : vector<8x256xf32>
    %cst_34 = arith.constant 1.000000e+00 : f32
    %190 = vector.broadcast %cst_34 : f32 to vector<8x256xf32>
    %191 = arith.addf %190, %189 : vector<8x256xf32>
    %192 = arith.divf %190, %191 : vector<8x256xf32>
    %193 = vector.extract_strided_slice %192 {offsets = [0, 0], sizes = [8, 64], strides = [1, 1]} : vector<8x256xf32> to vector<8x64xf32>
    %194 = vector.extract_strided_slice %192 {offsets = [0, 64], sizes = [8, 64], strides = [1, 1]} : vector<8x256xf32> to vector<8x64xf32>
    %195 = vector.extract_strided_slice %192 {offsets = [0, 192], sizes = [8, 64], strides = [1, 1]} : vector<8x256xf32> to vector<8x64xf32>
    %196 = vector.extract_strided_slice %187 {offsets = [0, 128], sizes = [8, 64], strides = [1, 1]} : vector<8x256xf32> to vector<8x64xf32>
    %197 = math.tanh %196 : vector<8x64xf32>
    %198 = arith.mulf %194, %161 : vector<8x64xf32>
    %199 = arith.mulf %193, %197 : vector<8x64xf32>
    %200 = arith.addf %198, %199 : vector<8x64xf32>
    %201 = math.tanh %200 : vector<8x64xf32>
    %202 = arith.mulf %195, %201 : vector<8x64xf32>
    %203 = vector.extract_strided_slice %5 {offsets = [40, 0], sizes = [8, 256], strides = [1, 1]} : vector<64x256xf32> to vector<8x256xf32>
    %204 = vector.extract_strided_slice %184 {offsets = [0, 0], sizes = [8, 256], strides = [1, 1]} : vector<8x512xf32> to vector<8x256xf32>
    %205 = arith.addf %203, %204 : vector<8x256xf32>
    %206 = arith.negf %205 : vector<8x256xf32>
    %207 = math.exp %206 : vector<8x256xf32>
    %cst_35 = arith.constant 1.000000e+00 : f32
    %208 = vector.broadcast %cst_35 : f32 to vector<8x256xf32>
    %209 = arith.addf %208, %207 : vector<8x256xf32>
    %210 = arith.divf %208, %209 : vector<8x256xf32>
    %211 = vector.extract_strided_slice %210 {offsets = [0, 0], sizes = [8, 64], strides = [1, 1]} : vector<8x256xf32> to vector<8x64xf32>
    %212 = vector.extract_strided_slice %210 {offsets = [0, 64], sizes = [8, 64], strides = [1, 1]} : vector<8x256xf32> to vector<8x64xf32>
    %213 = vector.extract_strided_slice %210 {offsets = [0, 192], sizes = [8, 64], strides = [1, 1]} : vector<8x256xf32> to vector<8x64xf32>
    %214 = vector.extract_strided_slice %205 {offsets = [0, 128], sizes = [8, 64], strides = [1, 1]} : vector<8x256xf32> to vector<8x64xf32>
    %215 = math.tanh %214 : vector<8x64xf32>
    %216 = arith.mulf %212, %179 : vector<8x64xf32>
    %217 = arith.mulf %211, %215 : vector<8x64xf32>
    %218 = arith.addf %216, %217 : vector<8x64xf32>
    %219 = math.tanh %218 : vector<8x64xf32>
    %220 = arith.mulf %213, %219 : vector<8x64xf32>
    %221 = tpu.concatenate %220, %202 in 1 : vector<8x64xf32>, vector<8x64xf32> -> vector<8x128xf32>
    %c0_36 = arith.constant 0 : index
    %c0_37 = arith.constant 0 : index
    %222 = vector.load %arg3[%c0_36, %c0_37] : memref<128x512xf32, #tpu.memory_space<vmem>>, vector<128x512xf32>
    %cst_38 = arith.constant dense<0.000000e+00> : vector<8x512xf32>
    %223 = tpu.matmul %221, %222, %cst_38 {dimension_numbers = #tpu.dot_dimension_numbers<[1], [0], [0], [1], [0, 0, 1, 1], [], []>} : vector<8x128xf32>, vector<128x512xf32>, vector<8x512xf32> -> vector<8x512xf32>
    %224 = vector.extract_strided_slice %223 {offsets = [0, 256], sizes = [8, 256], strides = [1, 1]} : vector<8x512xf32> to vector<8x256xf32>
    %225 = vector.broadcast %9 : vector<1x256xf32> to vector<8x256xf32>
    %226 = arith.addf %224, %225 : vector<8x256xf32>
    %227 = arith.negf %226 : vector<8x256xf32>
    %228 = math.exp %227 : vector<8x256xf32>
    %cst_39 = arith.constant 1.000000e+00 : f32
    %229 = vector.broadcast %cst_39 : f32 to vector<8x256xf32>
    %230 = arith.addf %229, %228 : vector<8x256xf32>
    %231 = arith.divf %229, %230 : vector<8x256xf32>
    %232 = vector.extract_strided_slice %231 {offsets = [0, 0], sizes = [8, 64], strides = [1, 1]} : vector<8x256xf32> to vector<8x64xf32>
    %233 = vector.extract_strided_slice %231 {offsets = [0, 64], sizes = [8, 64], strides = [1, 1]} : vector<8x256xf32> to vector<8x64xf32>
    %234 = vector.extract_strided_slice %231 {offsets = [0, 192], sizes = [8, 64], strides = [1, 1]} : vector<8x256xf32> to vector<8x64xf32>
    %235 = vector.extract_strided_slice %226 {offsets = [0, 128], sizes = [8, 64], strides = [1, 1]} : vector<8x256xf32> to vector<8x64xf32>
    %236 = math.tanh %235 : vector<8x64xf32>
    %237 = arith.mulf %233, %200 : vector<8x64xf32>
    %238 = arith.mulf %232, %236 : vector<8x64xf32>
    %239 = arith.addf %237, %238 : vector<8x64xf32>
    %240 = math.tanh %239 : vector<8x64xf32>
    %241 = arith.mulf %234, %240 : vector<8x64xf32>
    %242 = vector.extract_strided_slice %5 {offsets = [48, 0], sizes = [8, 256], strides = [1, 1]} : vector<64x256xf32> to vector<8x256xf32>
    %243 = vector.extract_strided_slice %223 {offsets = [0, 0], sizes = [8, 256], strides = [1, 1]} : vector<8x512xf32> to vector<8x256xf32>
    %244 = arith.addf %242, %243 : vector<8x256xf32>
    %245 = arith.negf %244 : vector<8x256xf32>
    %246 = math.exp %245 : vector<8x256xf32>
    %cst_40 = arith.constant 1.000000e+00 : f32
    %247 = vector.broadcast %cst_40 : f32 to vector<8x256xf32>
    %248 = arith.addf %247, %246 : vector<8x256xf32>
    %249 = arith.divf %247, %248 : vector<8x256xf32>
    %250 = vector.extract_strided_slice %249 {offsets = [0, 0], sizes = [8, 64], strides = [1, 1]} : vector<8x256xf32> to vector<8x64xf32>
    %251 = vector.extract_strided_slice %249 {offsets = [0, 64], sizes = [8, 64], strides = [1, 1]} : vector<8x256xf32> to vector<8x64xf32>
    %252 = vector.extract_strided_slice %249 {offsets = [0, 192], sizes = [8, 64], strides = [1, 1]} : vector<8x256xf32> to vector<8x64xf32>
    %253 = vector.extract_strided_slice %244 {offsets = [0, 128], sizes = [8, 64], strides = [1, 1]} : vector<8x256xf32> to vector<8x64xf32>
    %254 = math.tanh %253 : vector<8x64xf32>
    %255 = arith.mulf %251, %218 : vector<8x64xf32>
    %256 = arith.mulf %250, %254 : vector<8x64xf32>
    %257 = arith.addf %255, %256 : vector<8x64xf32>
    %258 = math.tanh %257 : vector<8x64xf32>
    %259 = arith.mulf %252, %258 : vector<8x64xf32>
    %260 = tpu.concatenate %259, %241 in 1 : vector<8x64xf32>, vector<8x64xf32> -> vector<8x128xf32>
    %c0_41 = arith.constant 0 : index
    %c0_42 = arith.constant 0 : index
    %261 = vector.load %arg3[%c0_41, %c0_42] : memref<128x512xf32, #tpu.memory_space<vmem>>, vector<128x512xf32>
    %cst_43 = arith.constant dense<0.000000e+00> : vector<8x512xf32>
    %262 = tpu.matmul %260, %261, %cst_43 {dimension_numbers = #tpu.dot_dimension_numbers<[1], [0], [0], [1], [0, 0, 1, 1], [], []>} : vector<8x128xf32>, vector<128x512xf32>, vector<8x512xf32> -> vector<8x512xf32>
    %263 = vector.extract_strided_slice %262 {offsets = [0, 256], sizes = [8, 256], strides = [1, 1]} : vector<8x512xf32> to vector<8x256xf32>
    %264 = vector.broadcast %9 : vector<1x256xf32> to vector<8x256xf32>
    %265 = arith.addf %263, %264 : vector<8x256xf32>
    %266 = arith.negf %265 : vector<8x256xf32>
    %267 = math.exp %266 : vector<8x256xf32>
    %cst_44 = arith.constant 1.000000e+00 : f32
    %268 = vector.broadcast %cst_44 : f32 to vector<8x256xf32>
    %269 = arith.addf %268, %267 : vector<8x256xf32>
    %270 = arith.divf %268, %269 : vector<8x256xf32>
    %271 = vector.extract_strided_slice %270 {offsets = [0, 0], sizes = [8, 64], strides = [1, 1]} : vector<8x256xf32> to vector<8x64xf32>
    %272 = vector.extract_strided_slice %270 {offsets = [0, 64], sizes = [8, 64], strides = [1, 1]} : vector<8x256xf32> to vector<8x64xf32>
    %273 = vector.extract_strided_slice %270 {offsets = [0, 192], sizes = [8, 64], strides = [1, 1]} : vector<8x256xf32> to vector<8x64xf32>
    %274 = vector.extract_strided_slice %265 {offsets = [0, 128], sizes = [8, 64], strides = [1, 1]} : vector<8x256xf32> to vector<8x64xf32>
    %275 = math.tanh %274 : vector<8x64xf32>
    %276 = arith.mulf %272, %239 : vector<8x64xf32>
    %277 = arith.mulf %271, %275 : vector<8x64xf32>
    %278 = arith.addf %276, %277 : vector<8x64xf32>
    %279 = math.tanh %278 : vector<8x64xf32>
    %280 = arith.mulf %273, %279 : vector<8x64xf32>
    %281 = vector.extract_strided_slice %5 {offsets = [56, 0], sizes = [8, 256], strides = [1, 1]} : vector<64x256xf32> to vector<8x256xf32>
    %282 = vector.extract_strided_slice %262 {offsets = [0, 0], sizes = [8, 256], strides = [1, 1]} : vector<8x512xf32> to vector<8x256xf32>
    %283 = arith.addf %281, %282 : vector<8x256xf32>
    %284 = arith.negf %283 : vector<8x256xf32>
    %285 = math.exp %284 : vector<8x256xf32>
    %cst_45 = arith.constant 1.000000e+00 : f32
    %286 = vector.broadcast %cst_45 : f32 to vector<8x256xf32>
    %287 = arith.addf %286, %285 : vector<8x256xf32>
    %288 = arith.divf %286, %287 : vector<8x256xf32>
    %289 = vector.extract_strided_slice %288 {offsets = [0, 0], sizes = [8, 64], strides = [1, 1]} : vector<8x256xf32> to vector<8x64xf32>
    %290 = vector.extract_strided_slice %288 {offsets = [0, 64], sizes = [8, 64], strides = [1, 1]} : vector<8x256xf32> to vector<8x64xf32>
    %291 = vector.extract_strided_slice %288 {offsets = [0, 192], sizes = [8, 64], strides = [1, 1]} : vector<8x256xf32> to vector<8x64xf32>
    %292 = vector.extract_strided_slice %283 {offsets = [0, 128], sizes = [8, 64], strides = [1, 1]} : vector<8x256xf32> to vector<8x64xf32>
    %293 = math.tanh %292 : vector<8x64xf32>
    %294 = arith.mulf %290, %257 : vector<8x64xf32>
    %295 = arith.mulf %289, %293 : vector<8x64xf32>
    %296 = arith.addf %294, %295 : vector<8x64xf32>
    %297 = math.tanh %296 : vector<8x64xf32>
    %298 = arith.mulf %291, %297 : vector<8x64xf32>
    %299 = tpu.concatenate %298, %280 in 1 : vector<8x64xf32>, vector<8x64xf32> -> vector<8x128xf32>
    %c0_46 = arith.constant 0 : index
    %c256 = arith.constant 256 : index
    %300 = vector.load %arg3[%c0_46, %c256] : memref<128x512xf32, #tpu.memory_space<vmem>>, vector<128x256xf32>
    %cst_47 = arith.constant dense<0.000000e+00> : vector<8x256xf32>
    %301 = tpu.matmul %299, %300, %cst_47 {dimension_numbers = #tpu.dot_dimension_numbers<[1], [0], [0], [1], [0, 0, 1, 1], [], []>} : vector<8x128xf32>, vector<128x256xf32>, vector<8x256xf32> -> vector<8x256xf32>
    %302 = vector.broadcast %9 : vector<1x256xf32> to vector<8x256xf32>
    %303 = arith.addf %301, %302 : vector<8x256xf32>
    %304 = arith.negf %303 : vector<8x256xf32>
    %305 = math.exp %304 : vector<8x256xf32>
    %cst_48 = arith.constant 1.000000e+00 : f32
    %306 = vector.broadcast %cst_48 : f32 to vector<8x256xf32>
    %307 = arith.addf %306, %305 : vector<8x256xf32>
    %308 = arith.divf %306, %307 : vector<8x256xf32>
    %309 = vector.extract_strided_slice %308 {offsets = [0, 0], sizes = [8, 64], strides = [1, 1]} : vector<8x256xf32> to vector<8x64xf32>
    %310 = vector.extract_strided_slice %308 {offsets = [0, 64], sizes = [8, 64], strides = [1, 1]} : vector<8x256xf32> to vector<8x64xf32>
    %311 = vector.extract_strided_slice %308 {offsets = [0, 192], sizes = [8, 64], strides = [1, 1]} : vector<8x256xf32> to vector<8x64xf32>
    %312 = vector.extract_strided_slice %303 {offsets = [0, 128], sizes = [8, 64], strides = [1, 1]} : vector<8x256xf32> to vector<8x64xf32>
    %313 = math.tanh %312 : vector<8x64xf32>
    %314 = arith.mulf %310, %278 : vector<8x64xf32>
    %315 = arith.mulf %309, %313 : vector<8x64xf32>
    %316 = arith.addf %314, %315 : vector<8x64xf32>
    %317 = math.tanh %316 : vector<8x64xf32>
    %318 = arith.mulf %311, %317 : vector<8x64xf32>
    %319 = tpu.concatenate %46, %85, %124, %163, %202, %241, %280, %318 in 0 : vector<8x64xf32>, vector<8x64xf32>, vector<8x64xf32>, vector<8x64xf32>, vector<8x64xf32>, vector<8x64xf32>, vector<8x64xf32>, vector<8x64xf32> -> vector<64x64xf32>
    %c0_49 = arith.constant 0 : index
    %c0_50 = arith.constant 0 : index
    %320 = vector.load %arg5[%c0_49, %c0_50] : memref<64x128xf32, #tpu.memory_space<vmem>>, vector<64x128xf32>
    %cst_51 = arith.constant dense<0.000000e+00> : vector<64x128xf32>
    %321 = tpu.matmul %319, %320, %cst_51 {dimension_numbers = #tpu.dot_dimension_numbers<[1], [0], [0], [1], [0, 0, 1, 1], [], []>} : vector<64x64xf32>, vector<64x128xf32>, vector<64x128xf32> -> vector<64x128xf32>
    %c0_52 = arith.constant 0 : index
    %c0_53 = arith.constant 0 : index
    %322 = vector.load %arg6[%c0_52, %c0_53] : memref<1x128xf32, #tpu.memory_space<vmem>>, vector<1x128xf32>
    %323 = vector.broadcast %322 : vector<1x128xf32> to vector<64x128xf32>
    %324 = arith.addf %321, %323 : vector<64x128xf32>
    %325 = math.tanh %324 : vector<64x128xf32>
    %c0_54 = arith.constant 0 : index
    %c0_55 = arith.constant 0 : index
    %326 = vector.load %arg7[%c0_54, %c0_55] : memref<128x64xf32, #tpu.memory_space<vmem>>, vector<128x64xf32>
    %cst_56 = arith.constant dense<0.000000e+00> : vector<64x64xf32>
    %327 = tpu.matmul %325, %326, %cst_56 {dimension_numbers = #tpu.dot_dimension_numbers<[1], [0], [0], [1], [0, 0, 1, 1], [], []>} : vector<64x128xf32>, vector<128x64xf32>, vector<64x64xf32> -> vector<64x64xf32>
    %c0_57 = arith.constant 0 : index
    %c0_58 = arith.constant 0 : index
    %328 = vector.load %arg8[%c0_57, %c0_58] : memref<1x64xf32, #tpu.memory_space<vmem>>, vector<1x64xf32>
    %329 = vector.broadcast %328 : vector<1x64xf32> to vector<64x64xf32>
    %330 = arith.addf %327, %329 : vector<64x64xf32>
    %331 = math.tanh %330 : vector<64x64xf32>
    %332 = tpu.concatenate %318, %318, %318, %318, %318, %318, %318, %318 in 0 : vector<8x64xf32>, vector<8x64xf32>, vector<8x64xf32>, vector<8x64xf32>, vector<8x64xf32>, vector<8x64xf32>, vector<8x64xf32>, vector<8x64xf32> -> vector<64x64xf32>
    %333 = arith.addf %331, %332 : vector<64x64xf32>
    %c0_59 = arith.constant 0 : index
    %c0_60 = arith.constant 0 : index
    %334 = vector.load %arg9[%c0_59, %c0_60] : memref<64x64xf32, #tpu.memory_space<vmem>>, vector<64x64xf32>
    %cst_61 = arith.constant dense<0.000000e+00> : vector<64x64xf32>
    %335 = tpu.matmul %333, %334, %cst_61 {dimension_numbers = #tpu.dot_dimension_numbers<[1], [0], [0], [1], [0, 0, 1, 1], [], []>} : vector<64x64xf32>, vector<64x64xf32>, vector<64x64xf32> -> vector<64x64xf32>
    %c0_62 = arith.constant 0 : index
    %c0_63 = arith.constant 0 : index
    %336 = vector.load %arg10[%c0_62, %c0_63] : memref<1x64xf32, #tpu.memory_space<vmem>>, vector<1x64xf32>
    %337 = vector.broadcast %336 : vector<1x64xf32> to vector<64x64xf32>
    %338 = arith.addf %335, %337 : vector<64x64xf32>
    %339 = arith.negf %338 : vector<64x64xf32>
    %340 = math.exp %339 : vector<64x64xf32>
    %cst_64 = arith.constant 1.000000e+00 : f32
    %341 = vector.broadcast %cst_64 : f32 to vector<64x64xf32>
    %342 = arith.addf %341, %340 : vector<64x64xf32>
    %343 = arith.divf %341, %342 : vector<64x64xf32>
    %c0_65 = arith.constant 0 : index
    %c0_66 = arith.constant 0 : index
    %344 = vector.load %arg11[%c0_65, %c0_66] : memref<64x64xf32, #tpu.memory_space<vmem>>, vector<64x64xf32>
    tpu.vector_store %arg11[%c0_65, %c0_66], %343 {strides = array<i32>} : memref<64x64xf32, #tpu.memory_space<vmem>>, vector<64x64xf32>,
    return
  }
}

</mosaic_0001>

<llo_original>
// kernel: dkt_f_forward.1
$region0: #{dkt_f_forward.1}
  #allocation0 [shape = 'u32[]', space=smem, size = 0x4, offset = 0x4, fixed_abs, tag = 'smem constant byte address 0x4 - core index']
  #allocation1 [shape = 'u32[144,128]{1,0:T(1,128)}', space=vmem, size = 0x12000, scoped, tag = 'internal scratch']
  %s0 = inlined_call_operand.vmem [shape: f32[64,32], index: 0, kind: input, shape index: {}]
  %s1 = inlined_call_operand.vmem [shape: f32[32,256], index: 1, kind: input, shape index: {}]
  %s2 = inlined_call_operand.vmem [shape: f32[1,256], index: 2, kind: input, shape index: {}]
  %s3 = inlined_call_operand.hbm [shape: f32[128,512], index: 3, kind: input, shape index: {}]
  %s4 = inlined_call_operand.vmem [shape: f32[1,256], index: 4, kind: input, shape index: {}]
  %s5 = inlined_call_operand.vmem [shape: f32[64,128], index: 5, kind: input, shape index: {}]
  %s6 = inlined_call_operand.vmem [shape: f32[1,128], index: 6, kind: input, shape index: {}]
  %s7 = inlined_call_operand.vmem [shape: f32[128,64], index: 7, kind: input, shape index: {}]
  %s8 = inlined_call_operand.vmem [shape: f32[1,64], index: 8, kind: input, shape index: {}]
  %s9 = inlined_call_operand.vmem [shape: f32[64,64], index: 9, kind: input, shape index: {}]
  %s10 = inlined_call_operand.vmem [shape: f32[1,64], index: 10, kind: input, shape index: {}]
  %s11 = inlined_call_operand.vmem [shape: f32[64,64], index: 11, kind: output, shape index: {}]
  %s12 = sld [smem:[#allocation0]]
  $region58: #{dkt_f_forward.1} parent=0
    _
  %s14 = ssub.s32 1, %s12
  %s15 = scalar_select 0, %s14, %s12
  $region1: #{dkt_f_forward.1} parent=0
    #allocation2 [shape = 'u8[262144]{0}', space=vmem, size = 0x40000, scoped, tag = 'input window, operand 3, single buffered']
    #allocation3 [shape = 's32[1]{0}', space=sflag, size = 0x4, scoped, tag = 'scoped memory for dkt_f_forward.1']
    %16 = vsyncpa [#allocation3], 0
    // Predicated region
    $region2: #{dkt_f_forward.1} parent=1 // pred_check
      _
    $region3: #{dkt_f_forward.1} parent=1 // pred_check_branch
      %18 = sbr.rel (0) target = $region5
    $region4: #{dkt_f_forward.1} parent=1 // pred_region
      _
    $region5: #{dkt_f_forward.1} parent=1 // pred_fallthru
      _
    // Predicated region
    $region6: #{dkt_f_forward.1} parent=1 // pred_check
      _
    $region7: #{dkt_f_forward.1} parent=1 // pred_check_branch
      %20 = sbr.rel (0) target = $region9
    $region8: #{dkt_f_forward.1} parent=1 // pred_region
      _
    $region9: #{dkt_f_forward.1} parent=1 // pred_fallthru
      _
    // Predicated region
    $region10: #{dkt_f_forward.1} parent=1 // pred_check
      _
    $region11: #{dkt_f_forward.1} parent=1 // pred_check_branch
      %22 = sbr.rel (0) target = $region13
    $region12: #{dkt_f_forward.1} parent=1 // pred_region
      _
    $region13: #{dkt_f_forward.1} parent=1 // pred_fallthru
      _
    // Predicated region
    $region14: #{dkt_f_forward.1} parent=1 // pred_check
      _
    $region15: #{dkt_f_forward.1} parent=1 // pred_check_branch
      %24 = sbr.rel (0) target = $region17
    $region16: #{dkt_f_forward.1} parent=1 // pred_region
      %s26 = ssub.s32 8192, 8192
      %27 = vsyncadd [#allocation3], %s26
      %s28 = sshll.u32 [#allocation2], 4
      %s29 = int_to_ptr.vmem [resolvable:$true] %s28
      %34 = dma.hbm_to_vmem [thread:$0]  %s3, 8192, %s29, [#allocation3], 512, 512, 32
    $region17: #{dkt_f_forward.1} parent=1 // pred_fallthru
      _
    // Predicated region
    $region18: #{dkt_f_forward.1} parent=1 // pred_check
      _
    $region19: #{dkt_f_forward.1} parent=1 // pred_check_branch
      %36 = sbr.rel (0) target = $region21
    $region20: #{dkt_f_forward.1} parent=1 // pred_region
      _
    $region21: #{dkt_f_forward.1} parent=1 // pred_fallthru
      _
    // Predicated region
    $region22: #{dkt_f_forward.1} parent=1 // pred_check
      _
    $region23: #{dkt_f_forward.1} parent=1 // pred_check_branch
      %38 = sbr.rel (0) target = $region25
    $region24: #{dkt_f_forward.1} parent=1 // pred_region
      _
    $region25: #{dkt_f_forward.1} parent=1 // pred_fallthru
      _
    // Predicated region
    $region26: #{dkt_f_forward.1} parent=1 // pred_check
      _
    $region27: #{dkt_f_forward.1} parent=1 // pred_check_branch
      %40 = sbr.rel (0) target = $region29
    $region28: #{dkt_f_forward.1} parent=1 // pred_region
      _
    $region29: #{dkt_f_forward.1} parent=1 // pred_fallthru
      _
    // Predicated region
    $region30: #{dkt_f_forward.1} parent=1 // pred_check
      _
    $region31: #{dkt_f_forward.1} parent=1 // pred_check_branch
      %42 = sbr.rel (0) target = $region33
    $region32: #{dkt_f_forward.1} parent=1 // pred_region
      _
    $region33: #{dkt_f_forward.1} parent=1 // pred_fallthru
      _
    // Predicated region
    $region34: #{dkt_f_forward.1} parent=1 // pred_check
      _
    $region35: #{dkt_f_forward.1} parent=1 // pred_check_branch
      %44 = sbr.rel (0) target = $region37
    $region36: #{dkt_f_forward.1} parent=1 // pred_region
      _
    $region37: #{dkt_f_forward.1} parent=1 // pred_fallthru
      _
    // Predicated region
    $region38: #{dkt_f_forward.1} parent=1 // pred_check
      _
    $region39: #{dkt_f_forward.1} parent=1 // pred_check_branch
      %46 = sbr.rel (0) target = $region41
    $region40: #{dkt_f_forward.1} parent=1 // pred_region
      _
    $region41: #{dkt_f_forward.1} parent=1 // pred_fallthru
      _
    // Predicated region
    $region42: #{dkt_f_forward.1} parent=1 // pred_check
      _
    $region43: #{dkt_f_forward.1} parent=1 // pred_check_branch
      %48 = sbr.rel (0) target = $region45
    $region44: #{dkt_f_forward.1} parent=1 // pred_region
      _
    $region45: #{dkt_f_forward.1} parent=1 // pred_fallthru
      _
    // Predicated region
    $region46: #{dkt_f_forward.1} parent=1 // pred_check
      _
    $region47: #{dkt_f_forward.1} parent=1 // pred_check_branch
      %50 = sbr.rel (0) target = $region49
    $region48: #{dkt_f_forward.1} parent=1 // pred_region
      %51 = dma.done [#allocation3], 8192
    $region49: #{dkt_f_forward.1} parent=1 // pred_fallthru
      _
    %v52 = vld [vmem:[%s0] sm:$0xff]
    %v53 = vld [vmem:[%s0 + $0x8] sm:$0xff]
    %v54 = vld [vmem:[%s0 + $0x10] sm:$0xff]
    %v55 = vld [vmem:[%s0 + $0x18] sm:$0xff]
    %v56 = vld [vmem:[%s0 + $0x20] sm:$0xff]
    %v57 = vld [vmem:[%s0 + $0x28] sm:$0xff]
    %v58 = vld [vmem:[%s0 + $0x30] sm:$0xff]
    %v59 = vld [vmem:[%s0 + $0x38] sm:$0xff]
    %v60 = vld [vmem:[%s1] sm:$0xff]
    %v61 = vld [vmem:[%s1 + $0x8] sm:$0xff]
    %v62 = vld [vmem:[%s1 + $0x10] sm:$0xff]
    %v63 = vld [vmem:[%s1 + $0x18] sm:$0xff]
    %v64 = vld [vmem:[%s1 + $0x20] sm:$0xff]
    %v65 = vld [vmem:[%s1 + $0x28] sm:$0xff]
    %v66 = vld [vmem:[%s1 + $0x30] sm:$0xff]
    %v67 = vld [vmem:[%s1 + $0x38] sm:$0xff]
    %v68 = vld [vmem:[%s2] sm:$0x3]
    %v70 = vlaneseq
    %v71 = vshrl.u32 %v70, 7
    %v72 = vsub.s32 0, %v71
    %v73 = vrot.slane %v68, %v72
    %v74 = vlaneseq
    %v75 = vshrl.u32 %v74, 7
    %v76 = vsub.s32 1, %v75
    %v77 = vrot.slane %v68, %v76
    %vm80 = vcmask 261120
    %v82 = vsel %vm80, %v52, 0
    %v85 = vsel %vm80, %v53, 0
    %v88 = vsel %vm80, %v54, 0
    %v91 = vsel %vm80, %v55, 0
    %v94 = vsel %vm80, %v56, 0
    %v97 = vsel %vm80, %v57, 0
    %v100 = vsel %vm80, %v58, 0
    %v103 = vsel %vm80, %v59, 0
    %105 = vmatprep.subr.mxu0 %v61
    %106 = vmatpush1.msra.mxu0 %v60
    %107 = vmatprep.subr.mxu0 %v63
    %108 = vmatpush1.msra.mxu0 %v62
    %109 = vmatprep.subr.mxu0 %v65
    %110 = vmatpush1.msra.mxu0 %v64
    %111 = vmatprep.subr.mxu0 %v67
    %112 = vmatpush1.msra.mxu0 %v66
    %113 = vmatprep.subr.mxu0 0.0
    %114 = vmatpush1.msra.mxu0 0.0
    %115 = vmatprep.subr.mxu0 0.0
    %116 = vmatpush1.msra.mxu0 0.0
    %117 = vmatprep.subr.mxu0 0.0
    %118 = vmatpush1.msra.mxu0 0.0
    %119 = vmatprep.subr.mxu0 0.0
    %120 = vmatpush1.msra.mxu0 0.0
    %121 = vmatprep.subr.mxu0 0.0
    %122 = vmatpush1.msra.mxu0 0.0
    %123 = vmatprep.subr.mxu0 0.0
    %124 = vmatpush1.msra.mxu0 0.0
    %125 = vmatprep.subr.mxu0 0.0
    %126 = vmatpush1.msra.mxu0 0.0
    %127 = vmatprep.subr.mxu0 0.0
    %128 = vmatpush1.msra.mxu0 0.0
    %129 = vmatprep.subr.mxu0 0.0
    %130 = vmatpush1.msra.mxu0 0.0
    %131 = vmatprep.subr.mxu0 0.0
    %132 = vmatpush1.msra.mxu0 0.0
    %133 = vmatprep.subr.mxu0 0.0
    %134 = vmatpush1.msra.mxu0 0.0
    %135 = vmatprep.subr.mxu0 0.0
    %136 = vmatpush1.msra.mxu0 0.0
    %137 = vmatprep.subr.mxu0 0.0
    %138 = vmatpush1.msra.mxu0 0.0
    %139 = vmatprep.subr.mxu0 0.0
    %140 = vmatpush1.msra.mxu0 0.0
    %141 = vmatprep.subr.mxu0 0.0
    %142 = vmatpush1.msra.mxu0 0.0
    %143 = vmatprep.subr.mxu0 0.0
    %144 = vmatpush1.msra.mxu0 0.0
    %145 = vmatprep.subr.mxu0 0.0
    %146 = vmatpush1.msra.mxu0 0.0
    %147 = vmatprep.subr.mxu0 0.0
    %148 = vmatpush1.msra.mxu0 0.0
    %149 = vmatprep.subr.mxu0 0.0
    %150 = vmatpush1.msra.mxu0 0.0
    %151 = vmatprep.subr.mxu0 0.0
    %152 = vmatpush1.msra.mxu0 0.0
    %153 = vmatprep.subr.mxu0 0.0
    %154 = vmatpush1.msra.mxu0 0.0
    %155 = vmatprep.subr.mxu0 0.0
    %156 = vmatpush1.msra.mxu0 0.0
    %157 = vmatprep.subr.mxu0 0.0
    %158 = vmatpush1.msra.mxu0 0.0
    %159 = vmatprep.subr.mxu0 0.0
    %160 = vmatpush1.msra.mxu0 0.0
    %161 = vmatprep.subr.mxu0 0.0
    %162 = vmatpush1.msra.mxu0 0.0
    %163 = vmatprep.subr.mxu0 0.0
    %164 = vmatpush1.msra.mxu0 0.0
    %165 = vmatprep.subr.mxu0 0.0
    %166 = vmatpush1.msra.mxu0 0.0
    %167 = vmatprep.subr.mxu0 0.0
    %168 = vmatpush1.msra.mxu0 0.0
    %169 = vmatprep.mubr.f32.mxu0 0.0
    %170 = vmatmul.mubr.f32.gmra.mrb[0].mxu0 %v82
    %v171 = vpop.f32.mrb[0].mxu0
    %v172 = vadd.f32 %v73, %v171
    %v173 = vpop.f32.mrb[0].mxu0
    %v174 = vadd.f32 %v77, %v173
    %175 = vmatprep.mubr.f32.mxu0 0.0
    %176 = vmatmul.mubr.f32.gmra.mrb[0].mxu0 %v85
    %v177 = vpop.f32.mrb[0].mxu0
    %v178 = vadd.f32 %v73, %v177
    %v179 = vpop.f32.mrb[0].mxu0
    %v180 = vadd.f32 %v77, %v179
    %181 = vmatprep.mubr.f32.mxu0 0.0
    %182 = vmatmul.mubr.f32.gmra.mrb[0].mxu0 %v88
    %v183 = vpop.f32.mrb[0].mxu0
    %v184 = vadd.f32 %v73, %v183
    %v185 = vpop.f32.mrb[0].mxu0
    %v186 = vadd.f32 %v77, %v185
    %187 = vmatprep.mubr.f32.mxu0 0.0
    %188 = vmatmul.mubr.f32.gmra.mrb[0].mxu0 %v91
    %v189 = vpop.f32.mrb[0].mxu0
    %v190 = vadd.f32 %v73, %v189
    %v191 = vpop.f32.mrb[0].mxu0
    %v192 = vadd.f32 %v77, %v191
    %193 = vmatprep.mubr.f32.mxu0 0.0
    %194 = vmatmul.mubr.f32.gmra.mrb[0].mxu0 %v94
    %v195 = vpop.f32.mrb[0].mxu0
    %v196 = vadd.f32 %v73, %v195
    %v197 = vpop.f32.mrb[0].mxu0
    %v198 = vadd.f32 %v77, %v197
    %199 = vmatprep.mubr.f32.mxu0 0.0
    %200 = vmatmul.mubr.f32.gmra.mrb[0].mxu0 %v97
    %v201 = vpop.f32.mrb[0].mxu0
    %v202 = vadd.f32 %v73, %v201
    %v203 = vpop.f32.mrb[0].mxu0
    %v204 = vadd.f32 %v77, %v203
    %205 = vmatprep.mubr.f32.mxu0 0.0
    %206 = vmatmul.mubr.f32.gmra.mrb[0].mxu0 %v100
    %v207 = vpop.f32.mrb[0].mxu0
    %v208 = vadd.f32 %v73, %v207
    %v209 = vpop.f32.mrb[0].mxu0
    %v210 = vadd.f32 %v77, %v209
    %211 = vmatprep.mubr.f32.mxu0 0.0
    %212 = vmatmul.mubr.f32.gmra.mrb[0].mxu0 %v103
    %v213 = vpop.f32.mrb[0].mxu0
    %v214 = vadd.f32 %v73, %v213
    %v215 = vpop.f32.mrb[0].mxu0
    %v216 = vadd.f32 %v77, %v215
    %217 = vdwg.mxu0
    %v218 = vld [vmem:[%s4] sm:$0x3]
    %v219 = vxor.u32 %v172, 2147483648
    %v220 = vxor.u32 %v174, 2147483648
    %v221 = vmul.f32 %v219, 1.442695
    %v222 = vpow.pop %v221
    %v223 = vmul.f32 %v220, 1.442695
    %v224 = vpow.pop %v223
    %v225 = vadd.f32 %v222, 1.0
    %v226 = vadd.f32 %v224, 1.0
    %v227 = vrcp.pop %v225
    %v228 = vmul.f32 1.0, %v227
    %v229 = vrcp.pop %v226
    %v230 = vmul.f32 1.0, %v229
    %v231 = vtanh.pop %v174
    %v232 = vmul.f32 %v228, 0.0
    %v233 = vmul.f32 %v228, %v231
    %235 = vrot.lane.b32.xlu0 %v233, 64
    %v236 = vpop.permute.xlu0 %235
    %v238 = vadd.f32 %v232, %v236
    %v239 = vtanh.pop %v238
    %v240 = vmul.f32 %v230, %v239
    %242 = vrot.lane.b32.xlu0 %v240, 64
    %v243 = vpop.permute.xlu0 %242
    %vm245 = vcmask 523264
    %v246 = vsel %vm245, %v243, 0.0
    %v247 = vld [vmem:[#allocation2] sm:$0xff]
    %v248 = vld [vmem:[#allocation2 + $0x8] sm:$0xff]
    %v249 = vld [vmem:[#allocation2 + $0x10] sm:$0xff]
    %v250 = vld [vmem:[#allocation2 + $0x18] sm:$0xff]
    %v251 = vld [vmem:[#allocation2 + $0x20] sm:$0xff]
    %v252 = vld [vmem:[#allocation2 + $0x28] sm:$0xff]
    %v253 = vld [vmem:[#allocation2 + $0x30] sm:$0xff]
    %v254 = vld [vmem:[#allocation2 + $0x38] sm:$0xff]
    %v255 = vld [vmem:[#allocation2 + $0x40] sm:$0xff]
    %v256 = vld [vmem:[#allocation2 + $0x48] sm:$0xff]
    %v257 = vld [vmem:[#allocation2 + $0x50] sm:$0xff]
    %v258 = vld [vmem:[#allocation2 + $0x58] sm:$0xff]
    %v259 = vld [vmem:[#allocation2 + $0x60] sm:$0xff]
    %v260 = vld [vmem:[#allocation2 + $0x68] sm:$0xff]
    %v261 = vld [vmem:[#allocation2 + $0x70] sm:$0xff]
    %v262 = vld [vmem:[#allocation2 + $0x78] sm:$0xff]
    %v263 = vld [vmem:[#allocation2 + $0x80] sm:$0xff]
    %v264 = vld [vmem:[#allocation2 + $0x88] sm:$0xff]
    %v265 = vld [vmem:[#allocation2 + $0x90] sm:$0xff]
    %v266 = vld [vmem:[#allocation2 + $0x98] sm:$0xff]
    %v267 = vld [vmem:[#allocation2 + $0xa0] sm:$0xff]
    %v268 = vld [vmem:[#allocation2 + $0xa8] sm:$0xff]
    %v269 = vld [vmem:[#allocation2 + $0xb0] sm:$0xff]
    %v270 = vld [vmem:[#allocation2 + $0xb8] sm:$0xff]
    %v271 = vld [vmem:[#allocation2 + $0xc0] sm:$0xff]
    %v272 = vld [vmem:[#allocation2 + $0xc8] sm:$0xff]
    %v273 = vld [vmem:[#allocation2 + $0xd0] sm:$0xff]
    %v274 = vld [vmem:[#allocation2 + $0xd8] sm:$0xff]
    %v275 = vld [vmem:[#allocation2 + $0xe0] sm:$0xff]
    %v276 = vld [vmem:[#allocation2 + $0xe8] sm:$0xff]
    %v277 = vld [vmem:[#allocation2 + $0xf0] sm:$0xff]
    %v278 = vld [vmem:[#allocation2 + $0xf8] sm:$0xff]
    %v279 = vld [vmem:[#allocation2 + $0x100] sm:$0xff]
    %v280 = vld [vmem:[#allocation2 + $0x108] sm:$0xff]
    %v281 = vld [vmem:[#allocation2 + $0x110] sm:$0xff]
    %v282 = vld [vmem:[#allocation2 + $0x118] sm:$0xff]
    %v283 = vld [vmem:[#allocation2 + $0x120] sm:$0xff]
    %v284 = vld [vmem:[#allocation2 + $0x128] sm:$0xff]
    %v285 = vld [vmem:[#allocation2 + $0x130] sm:$0xff]
    %v286 = vld [vmem:[#allocation2 + $0x138] sm:$0xff]
    %v287 = vld [vmem:[#allocation2 + $0x140] sm:$0xff]
    %v288 = vld [vmem:[#allocation2 + $0x148] sm:$0xff]
    %v289 = vld [vmem:[#allocation2 + $0x150] sm:$0xff]
    %v290 = vld [vmem:[#allocation2 + $0x158] sm:$0xff]
    %v291 = vld [vmem:[#allocation2 + $0x160] sm:$0xff]
    %v292 = vld [vmem:[#allocation2 + $0x168] sm:$0xff]
    %v293 = vld [vmem:[#allocation2 + $0x170] sm:$0xff]
    %v294 = vld [vmem:[#allocation2 + $0x178] sm:$0xff]
    %v295 = vld [vmem:[#allocation2 + $0x180] sm:$0xff]
    %v296 = vld [vmem:[#allocation2 + $0x188] sm:$0xff]
    %v297 = vld [vmem:[#allocation2 + $0x190] sm:$0xff]
    %v298 = vld [vmem:[#allocation2 + $0x198] sm:$0xff]
    %v299 = vld [vmem:[#allocation2 + $0x1a0] sm:$0xff]
    %v300 = vld [vmem:[#allocation2 + $0x1a8] sm:$0xff]
    %v301 = vld [vmem:[#allocation2 + $0x1b0] sm:$0xff]
    %v302 = vld [vmem:[#allocation2 + $0x1b8] sm:$0xff]
    %v303 = vld [vmem:[#allocation2 + $0x1c0] sm:$0xff]
    %v304 = vld [vmem:[#allocation2 + $0x1c8] sm:$0xff]
    %v305 = vld [vmem:[#allocation2 + $0x1d0] sm:$0xff]
    %v306 = vld [vmem:[#allocation2 + $0x1d8] sm:$0xff]
    %v307 = vld [vmem:[#allocation2 + $0x1e0] sm:$0xff]
    %v308 = vld [vmem:[#allocation2 + $0x1e8] sm:$0xff]
    %v309 = vld [vmem:[#allocation2 + $0x1f0] sm:$0xff]
    %v310 = vld [vmem:[#allocation2 + $0x1f8] sm:$0xff]
    %311 = vmatprep.subr.mxu0 %v248
    %312 = vmatpush1.msra.mxu0 %v247
    %313 = vmatprep.subr.mxu0 %v252
    %314 = vmatpush1.msra.mxu0 %v251
    %315 = vmatprep.subr.mxu0 %v256
    %316 = vmatpush1.msra.mxu0 %v255
    %317 = vmatprep.subr.mxu0 %v260
    %318 = vmatpush1.msra.mxu0 %v259
    %319 = vmatprep.subr.mxu0 %v264
    %320 = vmatpush1.msra.mxu0 %v263
    %321 = vmatprep.subr.mxu0 %v268
    %322 = vmatpush1.msra.mxu0 %v267
    %323 = vmatprep.subr.mxu0 %v272
    %324 = vmatpush1.msra.mxu0 %v271
    %325 = vmatprep.subr.mxu0 %v276
    %326 = vmatpush1.msra.mxu0 %v275
    %327 = vmatprep.subr.mxu0 %v280
    %328 = vmatpush1.msra.mxu0 %v279
    %329 = vmatprep.subr.mxu0 %v284
    %330 = vmatpush1.msra.mxu0 %v283
    %331 = vmatprep.subr.mxu0 %v288
    %332 = vmatpush1.msra.mxu0 %v287
    %333 = vmatprep.subr.mxu0 %v292
    %334 = vmatpush1.msra.mxu0 %v291
    %335 = vmatprep.subr.mxu0 %v296
    %336 = vmatpush1.msra.mxu0 %v295
    %337 = vmatprep.subr.mxu0 %v300
    %338 = vmatpush1.msra.mxu0 %v299
    %339 = vmatprep.subr.mxu0 %v304
    %340 = vmatpush1.msra.mxu0 %v303
    %341 = vmatprep.subr.mxu0 %v308
    %342 = vmatpush1.msra.mxu0 %v307
    %343 = vmatprep.subr.mxu0 0.0
    %344 = vmatpush1.msra.mxu0 0.0
    %345 = vmatprep.subr.mxu0 0.0
    %346 = vmatpush1.msra.mxu0 0.0
    %347 = vmatprep.subr.mxu0 0.0
    %348 = vmatpush1.msra.mxu0 0.0
    %349 = vmatprep.subr.mxu0 0.0
    %350 = vmatpush1.msra.mxu0 0.0
    %351 = vmatprep.subr.mxu0 0.0
    %352 = vmatpush1.msra.mxu0 0.0
    %353 = vmatprep.subr.mxu0 0.0
    %354 = vmatpush1.msra.mxu0 0.0
    %355 = vmatprep.subr.mxu0 0.0
    %356 = vmatpush1.msra.mxu0 0.0
    %357 = vmatprep.subr.mxu0 0.0
    %358 = vmatpush1.msra.mxu0 0.0
    %359 = vmatprep.subr.mxu0 0.0
    %360 = vmatpush1.msra.mxu0 0.0
    %361 = vmatprep.subr.mxu0 0.0
    %362 = vmatpush1.msra.mxu0 0.0
    %363 = vmatprep.subr.mxu0 0.0
    %364 = vmatpush1.msra.mxu0 0.0
    %365 = vmatprep.subr.mxu0 0.0
    %366 = vmatpush1.msra.mxu0 0.0
    %367 = vmatprep.subr.mxu0 0.0
    %368 = vmatpush1.msra.mxu0 0.0
    %369 = vmatprep.subr.mxu0 0.0
    %370 = vmatpush1.msra.mxu0 0.0
    %371 = vmatprep.subr.mxu0 0.0
    %372 = vmatpush1.msra.mxu0 0.0
    %373 = vmatprep.subr.mxu0 0.0
    %374 = vmatpush1.msra.mxu0 0.0
    %375 = vmatprep.mubr.f32.mxu0 0.0
    %376 = vmatmul.mubr.f32.gmra.mrb[0].mxu0 %v246
    %v377 = vpop.f32.mrb[0].mxu0
    %v378 = vadd.f32 0.0, %v377
    %v379 = vpop.f32.mrb[0].mxu0
    %v380 = vadd.f32 0.0, %v379
    %381 = vdwg.mxu0
    %382 = vmatprep.subr.mxu0 %v250
    %383 = vmatpush1.msra.mxu0 %v249
    %384 = vmatprep.subr.mxu0 %v254
    %385 = vmatpush1.msra.mxu0 %v253
    %386 = vmatprep.subr.mxu0 %v258
    %387 = vmatpush1.msra.mxu0 %v257
    %388 = vmatprep.subr.mxu0 %v262
    %389 = vmatpush1.msra.mxu0 %v261
    %390 = vmatprep.subr.mxu0 %v266
    %391 = vmatpush1.msra.mxu0 %v265
    %392 = vmatprep.subr.mxu0 %v270
    %393 = vmatpush1.msra.mxu0 %v269
    %394 = vmatprep.subr.mxu0 %v274
    %395 = vmatpush1.msra.mxu0 %v273
    %396 = vmatprep.subr.mxu0 %v278
    %397 = vmatpush1.msra.mxu0 %v277
    %398 = vmatprep.subr.mxu0 %v282
    %399 = vmatpush1.msra.mxu0 %v281
    %400 = vmatprep.subr.mxu0 %v286
    %401 = vmatpush1.msra.mxu0 %v285
    %402 = vmatprep.subr.mxu0 %v290
    %403 = vmatpush1.msra.mxu0 %v289
    %404 = vmatprep.subr.mxu0 %v294
    %405 = vmatpush1.msra.mxu0 %v293
    %406 = vmatprep.subr.mxu0 %v298
    %407 = vmatpush1.msra.mxu0 %v297
    %408 = vmatprep.subr.mxu0 %v302
    %409 = vmatpush1.msra.mxu0 %v301
    %410 = vmatprep.subr.mxu0 %v306
    %411 = vmatpush1.msra.mxu0 %v305
    %412 = vmatprep.subr.mxu0 %v310
    %413 = vmatpush1.msra.mxu0 %v309
    %414 = vmatprep.subr.mxu0 0.0
    %415 = vmatpush1.msra.mxu0 0.0
    %416 = vmatprep.subr.mxu0 0.0
    %417 = vmatpush1.msra.mxu0 0.0
    %418 = vmatprep.subr.mxu0 0.0
    %419 = vmatpush1.msra.mxu0 0.0
    %420 = vmatprep.subr.mxu0 0.0
    %421 = vmatpush1.msra.mxu0 0.0
    %422 = vmatprep.subr.mxu0 0.0
    %423 = vmatpush1.msra.mxu0 0.0
    %424 = vmatprep.subr.mxu0 0.0
    %425 = vmatpush1.msra.mxu0 0.0
    %426 = vmatprep.subr.mxu0 0.0
    %427 = vmatpush1.msra.mxu0 0.0
    %428 = vmatprep.subr.mxu0 0.0
    %429 = vmatpush1.msra.mxu0 0.0
    %430 = vmatprep.subr.mxu0 0.0
    %431 = vmatpush1.msra.mxu0 0.0
    %432 = vmatprep.subr.mxu0 0.0
    %433 = vmatpush1.msra.mxu0 0.0
    %434 = vmatprep.subr.mxu0 0.0
    %435 = vmatpush1.msra.mxu0 0.0
    %436 = vmatprep.subr.mxu0 0.0
    %437 = vmatpush1.msra.mxu0 0.0
    %438 = vmatprep.subr.mxu0 0.0
    %439 = vmatpush1.msra.mxu0 0.0
    %440 = vmatprep.subr.mxu0 0.0
    %441 = vmatpush1.msra.mxu0 0.0
    %442 = vmatprep.subr.mxu0 0.0
    %443 = vmatpush1.msra.mxu0 0.0
    %444 = vmatprep.subr.mxu0 0.0
    %445 = vmatpush1.msra.mxu0 0.0
    %446 = vmatprep.mubr.f32.mxu0 0.0
    %447 = vmatmul.mubr.f32.gmra.mrb[0].mxu0 %v246
    %v448 = vpop.f32.mrb[0].mxu0
    %v449 = vadd.f32 0.0, %v448
    %v450 = vpop.f32.mrb[0].mxu0
    %v451 = vadd.f32 0.0, %v450
    %452 = vdwg.mxu0
    %v454 = vlaneseq
    %v455 = vshrl.u32 %v454, 7
    %v456 = vsub.s32 0, %v455
    %v457 = vrot.slane %v218, %v456
    %v458 = vlaneseq
    %v459 = vshrl.u32 %v458, 7
    %v460 = vsub.s32 1, %v459
    %v461 = vrot.slane %v218, %v460
    %v464 = vadd.f32 %v449, %v457
    %v465 = vadd.f32 %v451, %v461
    %v466 = vxor.u32 %v464, 2147483648
    %v467 = vxor.u32 %v465, 2147483648
    %v468 = vmul.f32 %v466, 1.442695
    %v469 = vpow.pop %v468
    %v470 = vmul.f32 %v467, 1.442695
    %v471 = vpow.pop %v470
    %v472 = vadd.f32 %v469, 1.0
    %v473 = vadd.f32 %v471, 1.0
    %v474 = vrcp.pop %v472
    %v475 = vmul.f32 1.0, %v474
    %v476 = vrcp.pop %v473
    %v477 = vmul.f32 1.0, %v476
    %v478 = vtanh.pop %v465
    %v479 = vmul.f32 %v475, 0.0
    %v480 = vmul.f32 %v475, %v478
    %482 = vrot.lane.b32.xlu0 %v480, 64
    %v483 = vpop.permute.xlu0 %482
    %v485 = vadd.f32 %v479, %v483
    %v486 = vtanh.pop %v485
    %v487 = vmul.f32 %v477, %v486
    %v488 = vadd.f32 %v178, %v378
    %v489 = vadd.f32 %v180, %v380
    %v490 = vxor.u32 %v488, 2147483648
    %v491 = vxor.u32 %v489, 2147483648
    %v492 = vmul.f32 %v490, 1.442695
    %v493 = vpow.pop %v492
    %v494 = vmul.f32 %v491, 1.442695
    %v495 = vpow.pop %v494
    %v496 = vadd.f32 %v493, 1.0
    %v497 = vadd.f32 %v495, 1.0
    %v498 = vrcp.pop %v496
    %v499 = vmul.f32 1.0, %v498
    %v500 = vrcp.pop %v497
    %v501 = vmul.f32 1.0, %v500
    %v502 = vtanh.pop %v489
    %v503 = vmul.f32 %v499, %v238
    %v504 = vmul.f32 %v499, %v502
    %506 = vrot.lane.b32.xlu0 %v504, 64
    %v507 = vpop.permute.xlu0 %506
    %v509 = vadd.f32 %v503, %v507
    %v510 = vtanh.pop %v509
    %v511 = vmul.f32 %v501, %v510
    %513 = vrot.lane.b32.xlu0 %v511, 64
    %v514 = vpop.permute.xlu0 %513
    %v516 = vsel %vm245, %v514, %v487
    %517 = vmatprep.subr.mxu0 %v248
    %518 = vmatpush1.msra.mxu0 %v247
    %519 = vmatprep.subr.mxu0 %v252
    %520 = vmatpush1.msra.mxu0 %v251
    %521 = vmatprep.subr.mxu0 %v256
    %522 = vmatpush1.msra.mxu0 %v255
    %523 = vmatprep.subr.mxu0 %v260
    %524 = vmatpush1.msra.mxu0 %v259
    %525 = vmatprep.subr.mxu0 %v264
    %526 = vmatpush1.msra.mxu0 %v263
    %527 = vmatprep.subr.mxu0 %v268
    %528 = vmatpush1.msra.mxu0 %v267
    %529 = vmatprep.subr.mxu0 %v272
    %530 = vmatpush1.msra.mxu0 %v271
    %531 = vmatprep.subr.mxu0 %v276
    %532 = vmatpush1.msra.mxu0 %v275
    %533 = vmatprep.subr.mxu0 %v280
    %534 = vmatpush1.msra.mxu0 %v279
    %535 = vmatprep.subr.mxu0 %v284
    %536 = vmatpush1.msra.mxu0 %v283
    %537 = vmatprep.subr.mxu0 %v288
    %538 = vmatpush1.msra.mxu0 %v287
    %539 = vmatprep.subr.mxu0 %v292
    %540 = vmatpush1.msra.mxu0 %v291
    %541 = vmatprep.subr.mxu0 %v296
    %542 = vmatpush1.msra.mxu0 %v295
    %543 = vmatprep.subr.mxu0 %v300
    %544 = vmatpush1.msra.mxu0 %v299
    %545 = vmatprep.subr.mxu0 %v304
    %546 = vmatpush1.msra.mxu0 %v303
    %547 = vmatprep.subr.mxu0 %v308
    %548 = vmatpush1.msra.mxu0 %v307
    %549 = vmatprep.subr.mxu0 0.0
    %550 = vmatpush1.msra.mxu0 0.0
    %551 = vmatprep.subr.mxu0 0.0
    %552 = vmatpush1.msra.mxu0 0.0
    %553 = vmatprep.subr.mxu0 0.0
    %554 = vmatpush1.msra.mxu0 0.0
    %555 = vmatprep.subr.mxu0 0.0
    %556 = vmatpush1.msra.mxu0 0.0
    %557 = vmatprep.subr.mxu0 0.0
    %558 = vmatpush1.msra.mxu0 0.0
    %559 = vmatprep.subr.mxu0 0.0
    %560 = vmatpush1.msra.mxu0 0.0
    %561 = vmatprep.subr.mxu0 0.0
    %562 = vmatpush1.msra.mxu0 0.0
    %563 = vmatprep.subr.mxu0 0.0
    %564 = vmatpush1.msra.mxu0 0.0
    %565 = vmatprep.subr.mxu0 0.0
    %566 = vmatpush1.msra.mxu0 0.0
    %567 = vmatprep.subr.mxu0 0.0
    %568 = vmatpush1.msra.mxu0 0.0
    %569 = vmatprep.subr.mxu0 0.0
    %570 = vmatpush1.msra.mxu0 0.0
    %571 = vmatprep.subr.mxu0 0.0
    %572 = vmatpush1.msra.mxu0 0.0
    %573 = vmatprep.subr.mxu0 0.0
    %574 = vmatpush1.msra.mxu0 0.0
    %575 = vmatprep.subr.mxu0 0.0
    %576 = vmatpush1.msra.mxu0 0.0
    %577 = vmatprep.subr.mxu0 0.0
    %578 = vmatpush1.msra.mxu0 0.0
    %579 = vmatprep.subr.mxu0 0.0
    %580 = vmatpush1.msra.mxu0 0.0
    %581 = vmatprep.mubr.f32.mxu0 0.0
    %582 = vmatmul.mubr.f32.gmra.mrb[0].mxu0 %v516
    %v583 = vpop.f32.mrb[0].mxu0
    %v584 = vadd.f32 0.0, %v583
    %v585 = vpop.f32.mrb[0].mxu0
    %v586 = vadd.f32 0.0, %v585
    %587 = vdwg.mxu0
    %588 = vmatprep.subr.mxu0 %v250
    %589 = vmatpush1.msra.mxu0 %v249
    %590 = vmatprep.subr.mxu0 %v254
    %591 = vmatpush1.msra.mxu0 %v253
    %592 = vmatprep.subr.mxu0 %v258
    %593 = vmatpush1.msra.mxu0 %v257
    %594 = vmatprep.subr.mxu0 %v262
    %595 = vmatpush1.msra.mxu0 %v261
    %596 = vmatprep.subr.mxu0 %v266
    %597 = vmatpush1.msra.mxu0 %v265
    %598 = vmatprep.subr.mxu0 %v270
    %599 = vmatpush1.msra.mxu0 %v269
    %600 = vmatprep.subr.mxu0 %v274
    %601 = vmatpush1.msra.mxu0 %v273
    %602 = vmatprep.subr.mxu0 %v278
    %603 = vmatpush1.msra.mxu0 %v277
    %604 = vmatprep.subr.mxu0 %v282
    %605 = vmatpush1.msra.mxu0 %v281
    %606 = vmatprep.subr.mxu0 %v286
    %607 = vmatpush1.msra.mxu0 %v285
    %608 = vmatprep.subr.mxu0 %v290
    %609 = vmatpush1.msra.mxu0 %v289
    %610 = vmatprep.subr.mxu0 %v294
    %611 = vmatpush1.msra.mxu0 %v293
    %612 = vmatprep.subr.mxu0 %v298
    %613 = vmatpush1.msra.mxu0 %v297
    %614 = vmatprep.subr.mxu0 %v302
    %615 = vmatpush1.msra.mxu0 %v301
    %616 = vmatprep.subr.mxu0 %v306
    %617 = vmatpush1.msra.mxu0 %v305
    %618 = vmatprep.subr.mxu0 %v310
    %619 = vmatpush1.msra.mxu0 %v309
    %620 = vmatprep.subr.mxu0 0.0
    %621 = vmatpush1.msra.mxu0 0.0
    %622 = vmatprep.subr.mxu0 0.0
    %623 = vmatpush1.msra.mxu0 0.0
    %624 = vmatprep.subr.mxu0 0.0
    %625 = vmatpush1.msra.mxu0 0.0
    %626 = vmatprep.subr.mxu0 0.0
    %627 = vmatpush1.msra.mxu0 0.0
    %628 = vmatprep.subr.mxu0 0.0
    %629 = vmatpush1.msra.mxu0 0.0
    %630 = vmatprep.subr.mxu0 0.0
    %631 = vmatpush1.msra.mxu0 0.0
    %632 = vmatprep.subr.mxu0 0.0
    %633 = vmatpush1.msra.mxu0 0.0
    %634 = vmatprep.subr.mxu0 0.0
    %635 = vmatpush1.msra.mxu0 0.0
    %636 = vmatprep.subr.mxu0 0.0
    %637 = vmatpush1.msra.mxu0 0.0
    %638 = vmatprep.subr.mxu0 0.0
    %639 = vmatpush1.msra.mxu0 0.0
    %640 = vmatprep.subr.mxu0 0.0
    %641 = vmatpush1.msra.mxu0 0.0
    %642 = vmatprep.subr.mxu0 0.0
    %643 = vmatpush1.msra.mxu0 0.0
    %644 = vmatprep.subr.mxu0 0.0
    %645 = vmatpush1.msra.mxu0 0.0
    %646 = vmatprep.subr.mxu0 0.0
    %647 = vmatpush1.msra.mxu0 0.0
    %648 = vmatprep.subr.mxu0 0.0
    %649 = vmatpush1.msra.mxu0 0.0
    %650 = vmatprep.subr.mxu0 0.0
    %651 = vmatpush1.msra.mxu0 0.0
    %652 = vmatprep.mubr.f32.mxu0 0.0
    %653 = vmatmul.mubr.f32.gmra.mrb[0].mxu0 %v516
    %v654 = vpop.f32.mrb[0].mxu0
    %v655 = vadd.f32 0.0, %v654
    %v656 = vpop.f32.mrb[0].mxu0
    %v657 = vadd.f32 0.0, %v656
    %658 = vdwg.mxu0
    %v659 = vadd.f32 %v655, %v457
    %v660 = vadd.f32 %v657, %v461
    %v661 = vxor.u32 %v659, 2147483648
    %v662 = vxor.u32 %v660, 2147483648
    %v663 = vmul.f32 %v661, 1.442695
    %v664 = vpow.pop %v663
    %v665 = vmul.f32 %v662, 1.442695
    %v666 = vpow.pop %v665
    %v667 = vadd.f32 %v664, 1.0
    %v668 = vadd.f32 %v666, 1.0
    %v669 = vrcp.pop %v667
    %v670 = vmul.f32 1.0, %v669
    %v671 = vrcp.pop %v668
    %v672 = vmul.f32 1.0, %v671
    %v673 = vtanh.pop %v660
    %v674 = vmul.f32 %v670, %v485
    %v675 = vmul.f32 %v670, %v673
    %677 = vrot.lane.b32.xlu0 %v675, 64
    %v678 = vpop.permute.xlu0 %677
    %v680 = vadd.f32 %v674, %v678
    %v681 = vtanh.pop %v680
    %v682 = vmul.f32 %v672, %v681
    %v683 = vadd.f32 %v184, %v584
    %v684 = vadd.f32 %v186, %v586
    %v685 = vxor.u32 %v683, 2147483648
    %v686 = vxor.u32 %v684, 2147483648
    %v687 = vmul.f32 %v685, 1.442695
    %v688 = vpow.pop %v687
    %v689 = vmul.f32 %v686, 1.442695
    %v690 = vpow.pop %v689
    %v691 = vadd.f32 %v688, 1.0
    %v692 = vadd.f32 %v690, 1.0
    %v693 = vrcp.pop %v691
    %v694 = vmul.f32 1.0, %v693
    %v695 = vrcp.pop %v692
    %v696 = vmul.f32 1.0, %v695
    %v697 = vtanh.pop %v684
    %v698 = vmul.f32 %v694, %v509
    %v699 = vmul.f32 %v694, %v697
    %701 = vrot.lane.b32.xlu0 %v699, 64
    %v702 = vpop.permute.xlu0 %701
    %v704 = vadd.f32 %v698, %v702
    %v705 = vtanh.pop %v704
    %v706 = vmul.f32 %v696, %v705
    %708 = vrot.lane.b32.xlu0 %v706, 64
    %v709 = vpop.permute.xlu0 %708
    %v711 = vsel %vm245, %v709, %v682
    %712 = vmatprep.subr.mxu0 %v248
    %713 = vmatpush1.msra.mxu0 %v247
    %714 = vmatprep.subr.mxu0 %v252
    %715 = vmatpush1.msra.mxu0 %v251
    %716 = vmatprep.subr.mxu0 %v256
    %717 = vmatpush1.msra.mxu0 %v255
    %718 = vmatprep.subr.mxu0 %v260
    %719 = vmatpush1.msra.mxu0 %v259
    %720 = vmatprep.subr.mxu0 %v264
    %721 = vmatpush1.msra.mxu0 %v263
    %722 = vmatprep.subr.mxu0 %v268
    %723 = vmatpush1.msra.mxu0 %v267
    %724 = vmatprep.subr.mxu0 %v272
    %725 = vmatpush1.msra.mxu0 %v271
    %726 = vmatprep.subr.mxu0 %v276
    %727 = vmatpush1.msra.mxu0 %v275
    %728 = vmatprep.subr.mxu0 %v280
    %729 = vmatpush1.msra.mxu0 %v279
    %730 = vmatprep.subr.mxu0 %v284
    %731 = vmatpush1.msra.mxu0 %v283
    %732 = vmatprep.subr.mxu0 %v288
    %733 = vmatpush1.msra.mxu0 %v287
    %734 = vmatprep.subr.mxu0 %v292
    %735 = vmatpush1.msra.mxu0 %v291
    %736 = vmatprep.subr.mxu0 %v296
    %737 = vmatpush1.msra.mxu0 %v295
    %738 = vmatprep.subr.mxu0 %v300
    %739 = vmatpush1.msra.mxu0 %v299
    %740 = vmatprep.subr.mxu0 %v304
    %741 = vmatpush1.msra.mxu0 %v303
    %742 = vmatprep.subr.mxu0 %v308
    %743 = vmatpush1.msra.mxu0 %v307
    %744 = vmatprep.subr.mxu0 0.0
    %745 = vmatpush1.msra.mxu0 0.0
    %746 = vmatprep.subr.mxu0 0.0
    %747 = vmatpush1.msra.mxu0 0.0
    %748 = vmatprep.subr.mxu0 0.0
    %749 = vmatpush1.msra.mxu0 0.0
    %750 = vmatprep.subr.mxu0 0.0
    %751 = vmatpush1.msra.mxu0 0.0
    %752 = vmatprep.subr.mxu0 0.0
    %753 = vmatpush1.msra.mxu0 0.0
    %754 = vmatprep.subr.mxu0 0.0
    %755 = vmatpush1.msra.mxu0 0.0
    %756 = vmatprep.subr.mxu0 0.0
    %757 = vmatpush1.msra.mxu0 0.0
    %758 = vmatprep.subr.mxu0 0.0
    %759 = vmatpush1.msra.mxu0 0.0
    %760 = vmatprep.subr.mxu0 0.0
    %761 = vmatpush1.msra.mxu0 0.0
    %762 = vmatprep.subr.mxu0 0.0
    %763 = vmatpush1.msra.mxu0 0.0
    %764 = vmatprep.subr.mxu0 0.0
    %765 = vmatpush1.msra.mxu0 0.0
    %766 = vmatprep.subr.mxu0 0.0
    %767 = vmatpush1.msra.mxu0 0.0
    %768 = vmatprep.subr.mxu0 0.0
    %769 = vmatpush1.msra.mxu0 0.0
    %770 = vmatprep.subr.mxu0 0.0
    %771 = vmatpush1.msra.mxu0 0.0
    %772 = vmatprep.subr.mxu0 0.0
    %773 = vmatpush1.msra.mxu0 0.0
    %774 = vmatprep.subr.mxu0 0.0
    %775 = vmatpush1.msra.mxu0 0.0
    %776 = vmatprep.mubr.f32.mxu0 0.0
    %777 = vmatmul.mubr.f32.gmra.mrb[0].mxu0 %v711
    %v778 = vpop.f32.mrb[0].mxu0
    %v779 = vadd.f32 0.0, %v778
    %v780 = vpop.f32.mrb[0].mxu0
    %v781 = vadd.f32 0.0, %v780
    %782 = vdwg.mxu0
    %783 = vmatprep.subr.mxu0 %v250
    %784 = vmatpush1.msra.mxu0 %v249
    %785 = vmatprep.subr.mxu0 %v254
    %786 = vmatpush1.msra.mxu0 %v253
    %787 = vmatprep.subr.mxu0 %v258
    %788 = vmatpush1.msra.mxu0 %v257
    %789 = vmatprep.subr.mxu0 %v262
    %790 = vmatpush1.msra.mxu0 %v261
    %791 = vmatprep.subr.mxu0 %v266
    %792 = vmatpush1.msra.mxu0 %v265
    %793 = vmatprep.subr.mxu0 %v270
    %794 = vmatpush1.msra.mxu0 %v269
    %795 = vmatprep.subr.mxu0 %v274
    %796 = vmatpush1.msra.mxu0 %v273
    %797 = vmatprep.subr.mxu0 %v278
    %798 = vmatpush1.msra.mxu0 %v277
    %799 = vmatprep.subr.mxu0 %v282
    %800 = vmatpush1.msra.mxu0 %v281
    %801 = vmatprep.subr.mxu0 %v286
    %802 = vmatpush1.msra.mxu0 %v285
    %803 = vmatprep.subr.mxu0 %v290
    %804 = vmatpush1.msra.mxu0 %v289
    %805 = vmatprep.subr.mxu0 %v294
    %806 = vmatpush1.msra.mxu0 %v293
    %807 = vmatprep.subr.mxu0 %v298
    %808 = vmatpush1.msra.mxu0 %v297
    %809 = vmatprep.subr.mxu0 %v302
    %810 = vmatpush1.msra.mxu0 %v301
    %811 = vmatprep.subr.mxu0 %v306
    %812 = vmatpush1.msra.mxu0 %v305
    %813 = vmatprep.subr.mxu0 %v310
    %814 = vmatpush1.msra.mxu0 %v309
    %815 = vmatprep.subr.mxu0 0.0
    %816 = vmatpush1.msra.mxu0 0.0
    %817 = vmatprep.subr.mxu0 0.0
    %818 = vmatpush1.msra.mxu0 0.0
    %819 = vmatprep.subr.mxu0 0.0
    %820 = vmatpush1.msra.mxu0 0.0
    %821 = vmatprep.subr.mxu0 0.0
    %822 = vmatpush1.msra.mxu0 0.0
    %823 = vmatprep.subr.mxu0 0.0
    %824 = vmatpush1.msra.mxu0 0.0
    %825 = vmatprep.subr.mxu0 0.0
    %826 = vmatpush1.msra.mxu0 0.0
    %827 = vmatprep.subr.mxu0 0.0
    %828 = vmatpush1.msra.mxu0 0.0
    %829 = vmatprep.subr.mxu0 0.0
    %830 = vmatpush1.msra.mxu0 0.0
    %831 = vmatprep.subr.mxu0 0.0
    %832 = vmatpush1.msra.mxu0 0.0
    %833 = vmatprep.subr.mxu0 0.0
    %834 = vmatpush1.msra.mxu0 0.0
    %835 = vmatprep.subr.mxu0 0.0
    %836 = vmatpush1.msra.mxu0 0.0
    %837 = vmatprep.subr.mxu0 0.0
    %838 = vmatpush1.msra.mxu0 0.0
    %839 = vmatprep.subr.mxu0 0.0
    %840 = vmatpush1.msra.mxu0 0.0
    %841 = vmatprep.subr.mxu0 0.0
    %842 = vmatpush1.msra.mxu0 0.0
    %843 = vmatprep.subr.mxu0 0.0
    %844 = vmatpush1.msra.mxu0 0.0
    %845 = vmatprep.subr.mxu0 0.0
    %846 = vmatpush1.msra.mxu0 0.0
    %847 = vmatprep.mubr.f32.mxu0 0.0
    %848 = vmatmul.mubr.f32.gmra.mrb[0].mxu0 %v711
    %v849 = vpop.f32.mrb[0].mxu0
    %v850 = vadd.f32 0.0, %v849
    %v851 = vpop.f32.mrb[0].mxu0
    %v852 = vadd.f32 0.0, %v851
    %853 = vdwg.mxu0
    %v854 = vadd.f32 %v850, %v457
    %v855 = vadd.f32 %v852, %v461
    %v856 = vxor.u32 %v854, 2147483648
    %v857 = vxor.u32 %v855, 2147483648
    %v858 = vmul.f32 %v856, 1.442695
    %v859 = vpow.pop %v858
    %v860 = vmul.f32 %v857, 1.442695
    %v861 = vpow.pop %v860
    %v862 = vadd.f32 %v859, 1.0
    %v863 = vadd.f32 %v861, 1.0
    %v864 = vrcp.pop %v862
    %v865 = vmul.f32 1.0, %v864
    %v866 = vrcp.pop %v863
    %v867 = vmul.f32 1.0, %v866
    %v868 = vtanh.pop %v855
    %v869 = vmul.f32 %v865, %v680
    %v870 = vmul.f32 %v865, %v868
    %872 = vrot.lane.b32.xlu0 %v870, 64
    %v873 = vpop.permute.xlu0 %872
    %v875 = vadd.f32 %v869, %v873
    %v876 = vtanh.pop %v875
    %v877 = vmul.f32 %v867, %v876
    %v878 = vadd.f32 %v190, %v779
    %v879 = vadd.f32 %v192, %v781
    %v880 = vxor.u32 %v878, 2147483648
    %v881 = vxor.u32 %v879, 2147483648
    %v882 = vmul.f32 %v880, 1.442695
    %v883 = vpow.pop %v882
    %v884 = vmul.f32 %v881, 1.442695
    %v885 = vpow.pop %v884
    %v886 = vadd.f32 %v883, 1.0
    %v887 = vadd.f32 %v885, 1.0
    %v888 = vrcp.pop %v886
    %v889 = vmul.f32 1.0, %v888
    %v890 = vrcp.pop %v887
    %v891 = vmul.f32 1.0, %v890
    %v892 = vtanh.pop %v879
    %v893 = vmul.f32 %v889, %v704
    %v894 = vmul.f32 %v889, %v892
    %896 = vrot.lane.b32.xlu0 %v894, 64
    %v897 = vpop.permute.xlu0 %896
    %v899 = vadd.f32 %v893, %v897
    %v900 = vtanh.pop %v899
    %v901 = vmul.f32 %v891, %v900
    %903 = vrot.lane.b32.xlu0 %v901, 64
    %v904 = vpop.permute.xlu0 %903
    %v906 = vsel %vm245, %v904, %v877
    %907 = vmatprep.subr.mxu0 %v248
    %908 = vmatpush1.msra.mxu0 %v247
    %909 = vmatprep.subr.mxu0 %v252
    %910 = vmatpush1.msra.mxu0 %v251
    %911 = vmatprep.subr.mxu0 %v256
    %912 = vmatpush1.msra.mxu0 %v255
    %913 = vmatprep.subr.mxu0 %v260
    %914 = vmatpush1.msra.mxu0 %v259
    %915 = vmatprep.subr.mxu0 %v264
    %916 = vmatpush1.msra.mxu0 %v263
    %917 = vmatprep.subr.mxu0 %v268
    %918 = vmatpush1.msra.mxu0 %v267
    %919 = vmatprep.subr.mxu0 %v272
    %920 = vmatpush1.msra.mxu0 %v271
    %921 = vmatprep.subr.mxu0 %v276
    %922 = vmatpush1.msra.mxu0 %v275
    %923 = vmatprep.subr.mxu0 %v280
    %924 = vmatpush1.msra.mxu0 %v279
    %925 = vmatprep.subr.mxu0 %v284
    %926 = vmatpush1.msra.mxu0 %v283
    %927 = vmatprep.subr.mxu0 %v288
    %928 = vmatpush1.msra.mxu0 %v287
    %929 = vmatprep.subr.mxu0 %v292
    %930 = vmatpush1.msra.mxu0 %v291
    %931 = vmatprep.subr.mxu0 %v296
    %932 = vmatpush1.msra.mxu0 %v295
    %933 = vmatprep.subr.mxu0 %v300
    %934 = vmatpush1.msra.mxu0 %v299
    %935 = vmatprep.subr.mxu0 %v304
    %936 = vmatpush1.msra.mxu0 %v303
    %937 = vmatprep.subr.mxu0 %v308
    %938 = vmatpush1.msra.mxu0 %v307
    %939 = vmatprep.subr.mxu0 0.0
    %940 = vmatpush1.msra.mxu0 0.0
    %941 = vmatprep.subr.mxu0 0.0
    %942 = vmatpush1.msra.mxu0 0.0
    %943 = vmatprep.subr.mxu0 0.0
    %944 = vmatpush1.msra.mxu0 0.0
    %945 = vmatprep.subr.mxu0 0.0
    %946 = vmatpush1.msra.mxu0 0.0
    %947 = vmatprep.subr.mxu0 0.0
    %948 = vmatpush1.msra.mxu0 0.0
    %949 = vmatprep.subr.mxu0 0.0
    %950 = vmatpush1.msra.mxu0 0.0
    %951 = vmatprep.subr.mxu0 0.0
    %952 = vmatpush1.msra.mxu0 0.0
    %953 = vmatprep.subr.mxu0 0.0
    %954 = vmatpush1.msra.mxu0 0.0
    %955 = vmatprep.subr.mxu0 0.0
    %956 = vmatpush1.msra.mxu0 0.0
    %957 = vmatprep.subr.mxu0 0.0
    %958 = vmatpush1.msra.mxu0 0.0
    %959 = vmatprep.subr.mxu0 0.0
    %960 = vmatpush1.msra.mxu0 0.0
    %961 = vmatprep.subr.mxu0 0.0
    %962 = vmatpush1.msra.mxu0 0.0
    %963 = vmatprep.subr.mxu0 0.0
    %964 = vmatpush1.msra.mxu0 0.0
    %965 = vmatprep.subr.mxu0 0.0
    %966 = vmatpush1.msra.mxu0 0.0
    %967 = vmatprep.subr.mxu0 0.0
    %968 = vmatpush1.msra.mxu0 0.0
    %969 = vmatprep.subr.mxu0 0.0
    %970 = vmatpush1.msra.mxu0 0.0
    %971 = vmatprep.mubr.f32.mxu0 0.0
    %972 = vmatmul.mubr.f32.gmra.mrb[0].mxu0 %v906
    %v973 = vpop.f32.mrb[0].mxu0
    %v974 = vadd.f32 0.0, %v973
    %v975 = vpop.f32.mrb[0].mxu0
    %v976 = vadd.f32 0.0, %v975
    %977 = vdwg.mxu0
    %978 = vmatprep.subr.mxu0 %v250
    %979 = vmatpush1.msra.mxu0 %v249
    %980 = vmatprep.subr.mxu0 %v254
    %981 = vmatpush1.msra.mxu0 %v253
    %982 = vmatprep.subr.mxu0 %v258
    %983 = vmatpush1.msra.mxu0 %v257
    %984 = vmatprep.subr.mxu0 %v262
    %985 = vmatpush1.msra.mxu0 %v261
    %986 = vmatprep.subr.mxu0 %v266
    %987 = vmatpush1.msra.mxu0 %v265
    %988 = vmatprep.subr.mxu0 %v270
    %989 = vmatpush1.msra.mxu0 %v269
    %990 = vmatprep.subr.mxu0 %v274
    %991 = vmatpush1.msra.mxu0 %v273
    %992 = vmatprep.subr.mxu0 %v278
    %993 = vmatpush1.msra.mxu0 %v277
    %994 = vmatprep.subr.mxu0 %v282
    %995 = vmatpush1.msra.mxu0 %v281
    %996 = vmatprep.subr.mxu0 %v286
    %997 = vmatpush1.msra.mxu0 %v285
    %998 = vmatprep.subr.mxu0 %v290
    %999 = vmatpush1.msra.mxu0 %v289
    %1000 = vmatprep.subr.mxu0 %v294
    %1001 = vmatpush1.msra.mxu0 %v293
    %1002 = vmatprep.subr.mxu0 %v298
    %1003 = vmatpush1.msra.mxu0 %v297
    %1004 = vmatprep.subr.mxu0 %v302
    %1005 = vmatpush1.msra.mxu0 %v301
    %1006 = vmatprep.subr.mxu0 %v306
    %1007 = vmatpush1.msra.mxu0 %v305
    %1008 = vmatprep.subr.mxu0 %v310
    %1009 = vmatpush1.msra.mxu0 %v309
    %1010 = vmatprep.subr.mxu0 0.0
    %1011 = vmatpush1.msra.mxu0 0.0
    %1012 = vmatprep.subr.mxu0 0.0
    %1013 = vmatpush1.msra.mxu0 0.0
    %1014 = vmatprep.subr.mxu0 0.0
    %1015 = vmatpush1.msra.mxu0 0.0
    %1016 = vmatprep.subr.mxu0 0.0
    %1017 = vmatpush1.msra.mxu0 0.0
    %1018 = vmatprep.subr.mxu0 0.0
    %1019 = vmatpush1.msra.mxu0 0.0
    %1020 = vmatprep.subr.mxu0 0.0
    %1021 = vmatpush1.msra.mxu0 0.0
    %1022 = vmatprep.subr.mxu0 0.0
    %1023 = vmatpush1.msra.mxu0 0.0
    %1024 = vmatprep.subr.mxu0 0.0
    %1025 = vmatpush1.msra.mxu0 0.0
    %1026 = vmatprep.subr.mxu0 0.0
    %1027 = vmatpush1.msra.mxu0 0.0
    %1028 = vmatprep.subr.mxu0 0.0
    %1029 = vmatpush1.msra.mxu0 0.0
    %1030 = vmatprep.subr.mxu0 0.0
    %1031 = vmatpush1.msra.mxu0 0.0
    %1032 = vmatprep.subr.mxu0 0.0
    %1033 = vmatpush1.msra.mxu0 0.0
    %1034 = vmatprep.subr.mxu0 0.0
    %1035 = vmatpush1.msra.mxu0 0.0
    %1036 = vmatprep.subr.mxu0 0.0
    %1037 = vmatpush1.msra.mxu0 0.0
    %1038 = vmatprep.subr.mxu0 0.0
    %1039 = vmatpush1.msra.mxu0 0.0
    %1040 = vmatprep.subr.mxu0 0.0
    %1041 = vmatpush1.msra.mxu0 0.0
    %1042 = vmatprep.mubr.f32.mxu0 0.0
    %1043 = vmatmul.mubr.f32.gmra.mrb[0].mxu0 %v906
    %v1044 = vpop.f32.mrb[0].mxu0
    %v1045 = vadd.f32 0.0, %v1044
    %v1046 = vpop.f32.mrb[0].mxu0
    %v1047 = vadd.f32 0.0, %v1046
    %1048 = vdwg.mxu0
    %v1049 = vadd.f32 %v1045, %v457
    %v1050 = vadd.f32 %v1047, %v461
    %v1051 = vxor.u32 %v1049, 2147483648
    %v1052 = vxor.u32 %v1050, 2147483648
    %v1053 = vmul.f32 %v1051, 1.442695
    %v1054 = vpow.pop %v1053
    %v1055 = vmul.f32 %v1052, 1.442695
    %v1056 = vpow.pop %v1055
    %v1057 = vadd.f32 %v1054, 1.0
    %v1058 = vadd.f32 %v1056, 1.0
    %v1059 = vrcp.pop %v1057
    %v1060 = vmul.f32 1.0, %v1059
    %v1061 = vrcp.pop %v1058
    %v1062 = vmul.f32 1.0, %v1061
    %v1063 = vtanh.pop %v1050
    %v1064 = vmul.f32 %v1060, %v875
    %v1065 = vmul.f32 %v1060, %v1063
    %1067 = vrot.lane.b32.xlu0 %v1065, 64
    %v1068 = vpop.permute.xlu0 %1067
    %v1070 = vadd.f32 %v1064, %v1068
    %v1071 = vtanh.pop %v1070
    %v1072 = vmul.f32 %v1062, %v1071
    %v1073 = vadd.f32 %v196, %v974
    %v1074 = vadd.f32 %v198, %v976
    %v1075 = vxor.u32 %v1073, 2147483648
    %v1076 = vxor.u32 %v1074, 2147483648
    %v1077 = vmul.f32 %v1075, 1.442695
    %v1078 = vpow.pop %v1077
    %v1079 = vmul.f32 %v1076, 1.442695
    %v1080 = vpow.pop %v1079
    %v1081 = vadd.f32 %v1078, 1.0
    %v1082 = vadd.f32 %v1080, 1.0
    %v1083 = vrcp.pop %v1081
    %v1084 = vmul.f32 1.0, %v1083
    %v1085 = vrcp.pop %v1082
    %v1086 = vmul.f32 1.0, %v1085
    %v1087 = vtanh.pop %v1074
    %v1088 = vmul.f32 %v1084, %v899
    %v1089 = vmul.f32 %v1084, %v1087
    %1091 = vrot.lane.b32.xlu0 %v1089, 64
    %v1092 = vpop.permute.xlu0 %1091
    %v1094 = vadd.f32 %v1088, %v1092
    %v1095 = vtanh.pop %v1094
    %v1096 = vmul.f32 %v1086, %v1095
    %1098 = vrot.lane.b32.xlu0 %v1096, 64
    %v1099 = vpop.permute.xlu0 %1098
    %v1101 = vsel %vm245, %v1099, %v1072
    %1102 = vmatprep.subr.mxu0 %v248
    %1103 = vmatpush1.msra.mxu0 %v247
    %1104 = vmatprep.subr.mxu0 %v252
    %1105 = vmatpush1.msra.mxu0 %v251
    %1106 = vmatprep.subr.mxu0 %v256
    %1107 = vmatpush1.msra.mxu0 %v255
    %1108 = vmatprep.subr.mxu0 %v260
    %1109 = vmatpush1.msra.mxu0 %v259
    %1110 = vmatprep.subr.mxu0 %v264
    %1111 = vmatpush1.msra.mxu0 %v263
    %1112 = vmatprep.subr.mxu0 %v268
    %1113 = vmatpush1.msra.mxu0 %v267
    %1114 = vmatprep.subr.mxu0 %v272
    %1115 = vmatpush1.msra.mxu0 %v271
    %1116 = vmatprep.subr.mxu0 %v276
    %1117 = vmatpush1.msra.mxu0 %v275
    %1118 = vmatprep.subr.mxu0 %v280
    %1119 = vmatpush1.msra.mxu0 %v279
    %1120 = vmatprep.subr.mxu0 %v284
    %1121 = vmatpush1.msra.mxu0 %v283
    %1122 = vmatprep.subr.mxu0 %v288
    %1123 = vmatpush1.msra.mxu0 %v287
    %1124 = vmatprep.subr.mxu0 %v292
    %1125 = vmatpush1.msra.mxu0 %v291
    %1126 = vmatprep.subr.mxu0 %v296
    %1127 = vmatpush1.msra.mxu0 %v295
    %1128 = vmatprep.subr.mxu0 %v300
    %1129 = vmatpush1.msra.mxu0 %v299
    %1130 = vmatprep.subr.mxu0 %v304
    %1131 = vmatpush1.msra.mxu0 %v303
    %1132 = vmatprep.subr.mxu0 %v308
    %1133 = vmatpush1.msra.mxu0 %v307
    %1134 = vmatprep.subr.mxu0 0.0
    %1135 = vmatpush1.msra.mxu0 0.0
    %1136 = vmatprep.subr.mxu0 0.0
    %1137 = vmatpush1.msra.mxu0 0.0
    %1138 = vmatprep.subr.mxu0 0.0
    %1139 = vmatpush1.msra.mxu0 0.0
    %1140 = vmatprep.subr.mxu0 0.0
    %1141 = vmatpush1.msra.mxu0 0.0
    %1142 = vmatprep.subr.mxu0 0.0
    %1143 = vmatpush1.msra.mxu0 0.0
    %1144 = vmatprep.subr.mxu0 0.0
    %1145 = vmatpush1.msra.mxu0 0.0
    %1146 = vmatprep.subr.mxu0 0.0
    %1147 = vmatpush1.msra.mxu0 0.0
    %1148 = vmatprep.subr.mxu0 0.0
    %1149 = vmatpush1.msra.mxu0 0.0
    %1150 = vmatprep.subr.mxu0 0.0
    %1151 = vmatpush1.msra.mxu0 0.0
    %1152 = vmatprep.subr.mxu0 0.0
    %1153 = vmatpush1.msra.mxu0 0.0
    %1154 = vmatprep.subr.mxu0 0.0
    %1155 = vmatpush1.msra.mxu0 0.0
    %1156 = vmatprep.subr.mxu0 0.0
    %1157 = vmatpush1.msra.mxu0 0.0
    %1158 = vmatprep.subr.mxu0 0.0
    %1159 = vmatpush1.msra.mxu0 0.0
    %1160 = vmatprep.subr.mxu0 0.0
    %1161 = vmatpush1.msra.mxu0 0.0
    %1162 = vmatprep.subr.mxu0 0.0
    %1163 = vmatpush1.msra.mxu0 0.0
    %1164 = vmatprep.subr.mxu0 0.0
    %1165 = vmatpush1.msra.mxu0 0.0
    %1166 = vmatprep.mubr.f32.mxu0 0.0
    %1167 = vmatmul.mubr.f32.gmra.mrb[0].mxu0 %v1101
    %v1168 = vpop.f32.mrb[0].mxu0
    %v1169 = vadd.f32 0.0, %v1168
    %v1170 = vpop.f32.mrb[0].mxu0
    %v1171 = vadd.f32 0.0, %v1170
    %1172 = vdwg.mxu0
    %1173 = vmatprep.subr.mxu0 %v250
    %1174 = vmatpush1.msra.mxu0 %v249
    %1175 = vmatprep.subr.mxu0 %v254
    %1176 = vmatpush1.msra.mxu0 %v253
    %1177 = vmatprep.subr.mxu0 %v258
    %1178 = vmatpush1.msra.mxu0 %v257
    %1179 = vmatprep.subr.mxu0 %v262
    %1180 = vmatpush1.msra.mxu0 %v261
    %1181 = vmatprep.subr.mxu0 %v266
    %1182 = vmatpush1.msra.mxu0 %v265
    %1183 = vmatprep.subr.mxu0 %v270
    %1184 = vmatpush1.msra.mxu0 %v269
    %1185 = vmatprep.subr.mxu0 %v274
    %1186 = vmatpush1.msra.mxu0 %v273
    %1187 = vmatprep.subr.mxu0 %v278
    %1188 = vmatpush1.msra.mxu0 %v277
    %1189 = vmatprep.subr.mxu0 %v282
    %1190 = vmatpush1.msra.mxu0 %v281
    %1191 = vmatprep.subr.mxu0 %v286
    %1192 = vmatpush1.msra.mxu0 %v285
    %1193 = vmatprep.subr.mxu0 %v290
    %1194 = vmatpush1.msra.mxu0 %v289
    %1195 = vmatprep.subr.mxu0 %v294
    %1196 = vmatpush1.msra.mxu0 %v293
    %1197 = vmatprep.subr.mxu0 %v298
    %1198 = vmatpush1.msra.mxu0 %v297
    %1199 = vmatprep.subr.mxu0 %v302
    %1200 = vmatpush1.msra.mxu0 %v301
    %1201 = vmatprep.subr.mxu0 %v306
    %1202 = vmatpush1.msra.mxu0 %v305
    %1203 = vmatprep.subr.mxu0 %v310
    %1204 = vmatpush1.msra.mxu0 %v309
    %1205 = vmatprep.subr.mxu0 0.0
    %1206 = vmatpush1.msra.mxu0 0.0
    %1207 = vmatprep.subr.mxu0 0.0
    %1208 = vmatpush1.msra.mxu0 0.0
    %1209 = vmatprep.subr.mxu0 0.0
    %1210 = vmatpush1.msra.mxu0 0.0
    %1211 = vmatprep.subr.mxu0 0.0
    %1212 = vmatpush1.msra.mxu0 0.0
    %1213 = vmatprep.subr.mxu0 0.0
    %1214 = vmatpush1.msra.mxu0 0.0
    %1215 = vmatprep.subr.mxu0 0.0
    %1216 = vmatpush1.msra.mxu0 0.0
    %1217 = vmatprep.subr.mxu0 0.0
    %1218 = vmatpush1.msra.mxu0 0.0
    %1219 = vmatprep.subr.mxu0 0.0
    %1220 = vmatpush1.msra.mxu0 0.0
    %1221 = vmatprep.subr.mxu0 0.0
    %1222 = vmatpush1.msra.mxu0 0.0
    %1223 = vmatprep.subr.mxu0 0.0
    %1224 = vmatpush1.msra.mxu0 0.0
    %1225 = vmatprep.subr.mxu0 0.0
    %1226 = vmatpush1.msra.mxu0 0.0
    %1227 = vmatprep.subr.mxu0 0.0
    %1228 = vmatpush1.msra.mxu0 0.0
    %1229 = vmatprep.subr.mxu0 0.0
    %1230 = vmatpush1.msra.mxu0 0.0
    %1231 = vmatprep.subr.mxu0 0.0
    %1232 = vmatpush1.msra.mxu0 0.0
    %1233 = vmatprep.subr.mxu0 0.0
    %1234 = vmatpush1.msra.mxu0 0.0
    %1235 = vmatprep.subr.mxu0 0.0
    %1236 = vmatpush1.msra.mxu0 0.0
    %1237 = vmatprep.mubr.f32.mxu0 0.0
    %1238 = vmatmul.mubr.f32.gmra.mrb[0].mxu0 %v1101
    %v1239 = vpop.f32.mrb[0].mxu0
    %v1240 = vadd.f32 0.0, %v1239
    %v1241 = vpop.f32.mrb[0].mxu0
    %v1242 = vadd.f32 0.0, %v1241
    %1243 = vdwg.mxu0
    %v1244 = vadd.f32 %v1240, %v457
    %v1245 = vadd.f32 %v1242, %v461
    %v1246 = vxor.u32 %v1244, 2147483648
    %v1247 = vxor.u32 %v1245, 2147483648
    %v1248 = vmul.f32 %v1246, 1.442695
    %v1249 = vpow.pop %v1248
    %v1250 = vmul.f32 %v1247, 1.442695
    %v1251 = vpow.pop %v1250
    %v1252 = vadd.f32 %v1249, 1.0
    %v1253 = vadd.f32 %v1251, 1.0
    %v1254 = vrcp.pop %v1252
    %v1255 = vmul.f32 1.0, %v1254
    %v1256 = vrcp.pop %v1253
    %v1257 = vmul.f32 1.0, %v1256
    %v1258 = vtanh.pop %v1245
    %v1259 = vmul.f32 %v1255, %v1070
    %v1260 = vmul.f32 %v1255, %v1258
    %1262 = vrot.lane.b32.xlu0 %v1260, 64
    %v1263 = vpop.permute.xlu0 %1262
    %v1265 = vadd.f32 %v1259, %v1263
    %v1266 = vtanh.pop %v1265
    %v1267 = vmul.f32 %v1257, %v1266
    %v1268 = vadd.f32 %v202, %v1169
    %v1269 = vadd.f32 %v204, %v1171
    %v1270 = vxor.u32 %v1268, 2147483648
    %v1271 = vxor.u32 %v1269, 2147483648
    %v1272 = vmul.f32 %v1270, 1.442695
    %v1273 = vpow.pop %v1272
    %v1274 = vmul.f32 %v1271, 1.442695
    %v1275 = vpow.pop %v1274
    %v1276 = vadd.f32 %v1273, 1.0
    %v1277 = vadd.f32 %v1275, 1.0
    %v1278 = vrcp.pop %v1276
    %v1279 = vmul.f32 1.0, %v1278
    %v1280 = vrcp.pop %v1277
    %v1281 = vmul.f32 1.0, %v1280
    %v1282 = vtanh.pop %v1269
    %v1283 = vmul.f32 %v1279, %v1094
    %v1284 = vmul.f32 %v1279, %v1282
    %1286 = vrot.lane.b32.xlu0 %v1284, 64
    %v1287 = vpop.permute.xlu0 %1286
    %v1289 = vadd.f32 %v1283, %v1287
    %v1290 = vtanh.pop %v1289
    %v1291 = vmul.f32 %v1281, %v1290
    %1293 = vrot.lane.b32.xlu0 %v1291, 64
    %v1294 = vpop.permute.xlu0 %1293
    %v1296 = vsel %vm245, %v1294, %v1267
    %1297 = vmatprep.subr.mxu0 %v248
    %1298 = vmatpush1.msra.mxu0 %v247
    %1299 = vmatprep.subr.mxu0 %v252
    %1300 = vmatpush1.msra.mxu0 %v251
    %1301 = vmatprep.subr.mxu0 %v256
    %1302 = vmatpush1.msra.mxu0 %v255
    %1303 = vmatprep.subr.mxu0 %v260
    %1304 = vmatpush1.msra.mxu0 %v259
    %1305 = vmatprep.subr.mxu0 %v264
    %1306 = vmatpush1.msra.mxu0 %v263
    %1307 = vmatprep.subr.mxu0 %v268
    %1308 = vmatpush1.msra.mxu0 %v267
    %1309 = vmatprep.subr.mxu0 %v272
    %1310 = vmatpush1.msra.mxu0 %v271
    %1311 = vmatprep.subr.mxu0 %v276
    %1312 = vmatpush1.msra.mxu0 %v275
    %1313 = vmatprep.subr.mxu0 %v280
    %1314 = vmatpush1.msra.mxu0 %v279
    %1315 = vmatprep.subr.mxu0 %v284
    %1316 = vmatpush1.msra.mxu0 %v283
    %1317 = vmatprep.subr.mxu0 %v288
    %1318 = vmatpush1.msra.mxu0 %v287
    %1319 = vmatprep.subr.mxu0 %v292
    %1320 = vmatpush1.msra.mxu0 %v291
    %1321 = vmatprep.subr.mxu0 %v296
    %1322 = vmatpush1.msra.mxu0 %v295
    %1323 = vmatprep.subr.mxu0 %v300
    %1324 = vmatpush1.msra.mxu0 %v299
    %1325 = vmatprep.subr.mxu0 %v304
    %1326 = vmatpush1.msra.mxu0 %v303
    %1327 = vmatprep.subr.mxu0 %v308
    %1328 = vmatpush1.msra.mxu0 %v307
    %1329 = vmatprep.subr.mxu0 0.0
    %1330 = vmatpush1.msra.mxu0 0.0
    %1331 = vmatprep.subr.mxu0 0.0
    %1332 = vmatpush1.msra.mxu0 0.0
    %1333 = vmatprep.subr.mxu0 0.0
    %1334 = vmatpush1.msra.mxu0 0.0
    %1335 = vmatprep.subr.mxu0 0.0
    %1336 = vmatpush1.msra.mxu0 0.0
    %1337 = vmatprep.subr.mxu0 0.0
    %1338 = vmatpush1.msra.mxu0 0.0
    %1339 = vmatprep.subr.mxu0 0.0
    %1340 = vmatpush1.msra.mxu0 0.0
    %1341 = vmatprep.subr.mxu0 0.0
    %1342 = vmatpush1.msra.mxu0 0.0
    %1343 = vmatprep.subr.mxu0 0.0
    %1344 = vmatpush1.msra.mxu0 0.0
    %1345 = vmatprep.subr.mxu0 0.0
    %1346 = vmatpush1.msra.mxu0 0.0
    %1347 = vmatprep.subr.mxu0 0.0
    %1348 = vmatpush1.msra.mxu0 0.0
    %1349 = vmatprep.subr.mxu0 0.0
    %1350 = vmatpush1.msra.mxu0 0.0
    %1351 = vmatprep.subr.mxu0 0.0
    %1352 = vmatpush1.msra.mxu0 0.0
    %1353 = vmatprep.subr.mxu0 0.0
    %1354 = vmatpush1.msra.mxu0 0.0
    %1355 = vmatprep.subr.mxu0 0.0
    %1356 = vmatpush1.msra.mxu0 0.0
    %1357 = vmatprep.subr.mxu0 0.0
    %1358 = vmatpush1.msra.mxu0 0.0
    %1359 = vmatprep.subr.mxu0 0.0
    %1360 = vmatpush1.msra.mxu0 0.0
    %1361 = vmatprep.mubr.f32.mxu0 0.0
    %1362 = vmatmul.mubr.f32.gmra.mrb[0].mxu0 %v1296
    %v1363 = vpop.f32.mrb[0].mxu0
    %v1364 = vadd.f32 0.0, %v1363
    %v1365 = vpop.f32.mrb[0].mxu0
    %v1366 = vadd.f32 0.0, %v1365
    %1367 = vdwg.mxu0
    %1368 = vmatprep.subr.mxu0 %v250
    %1369 = vmatpush1.msra.mxu0 %v249
    %1370 = vmatprep.subr.mxu0 %v254
    %1371 = vmatpush1.msra.mxu0 %v253
    %1372 = vmatprep.subr.mxu0 %v258
    %1373 = vmatpush1.msra.mxu0 %v257
    %1374 = vmatprep.subr.mxu0 %v262
    %1375 = vmatpush1.msra.mxu0 %v261
    %1376 = vmatprep.subr.mxu0 %v266
    %1377 = vmatpush1.msra.mxu0 %v265
    %1378 = vmatprep.subr.mxu0 %v270
    %1379 = vmatpush1.msra.mxu0 %v269
    %1380 = vmatprep.subr.mxu0 %v274
    %1381 = vmatpush1.msra.mxu0 %v273
    %1382 = vmatprep.subr.mxu0 %v278
    %1383 = vmatpush1.msra.mxu0 %v277
    %1384 = vmatprep.subr.mxu0 %v282
    %1385 = vmatpush1.msra.mxu0 %v281
    %1386 = vmatprep.subr.mxu0 %v286
    %1387 = vmatpush1.msra.mxu0 %v285
    %1388 = vmatprep.subr.mxu0 %v290
    %1389 = vmatpush1.msra.mxu0 %v289
    %1390 = vmatprep.subr.mxu0 %v294
    %1391 = vmatpush1.msra.mxu0 %v293
    %1392 = vmatprep.subr.mxu0 %v298
    %1393 = vmatpush1.msra.mxu0 %v297
    %1394 = vmatprep.subr.mxu0 %v302
    %1395 = vmatpush1.msra.mxu0 %v301
    %1396 = vmatprep.subr.mxu0 %v306
    %1397 = vmatpush1.msra.mxu0 %v305
    %1398 = vmatprep.subr.mxu0 %v310
    %1399 = vmatpush1.msra.mxu0 %v309
    %1400 = vmatprep.subr.mxu0 0.0
    %1401 = vmatpush1.msra.mxu0 0.0
    %1402 = vmatprep.subr.mxu0 0.0
    %1403 = vmatpush1.msra.mxu0 0.0
    %1404 = vmatprep.subr.mxu0 0.0
    %1405 = vmatpush1.msra.mxu0 0.0
    %1406 = vmatprep.subr.mxu0 0.0
    %1407 = vmatpush1.msra.mxu0 0.0
    %1408 = vmatprep.subr.mxu0 0.0
    %1409 = vmatpush1.msra.mxu0 0.0
    %1410 = vmatprep.subr.mxu0 0.0
    %1411 = vmatpush1.msra.mxu0 0.0
    %1412 = vmatprep.subr.mxu0 0.0
    %1413 = vmatpush1.msra.mxu0 0.0
    %1414 = vmatprep.subr.mxu0 0.0
    %1415 = vmatpush1.msra.mxu0 0.0
    %1416 = vmatprep.subr.mxu0 0.0
    %1417 = vmatpush1.msra.mxu0 0.0
    %1418 = vmatprep.subr.mxu0 0.0
    %1419 = vmatpush1.msra.mxu0 0.0
    %1420 = vmatprep.subr.mxu0 0.0
    %1421 = vmatpush1.msra.mxu0 0.0
    %1422 = vmatprep.subr.mxu0 0.0
    %1423 = vmatpush1.msra.mxu0 0.0
    %1424 = vmatprep.subr.mxu0 0.0
    %1425 = vmatpush1.msra.mxu0 0.0
    %1426 = vmatprep.subr.mxu0 0.0
    %1427 = vmatpush1.msra.mxu0 0.0
    %1428 = vmatprep.subr.mxu0 0.0
    %1429 = vmatpush1.msra.mxu0 0.0
    %1430 = vmatprep.subr.mxu0 0.0
    %1431 = vmatpush1.msra.mxu0 0.0
    %1432 = vmatprep.mubr.f32.mxu0 0.0
    %1433 = vmatmul.mubr.f32.gmra.mrb[0].mxu0 %v1296
    %v1434 = vpop.f32.mrb[0].mxu0
    %v1435 = vadd.f32 0.0, %v1434
    %v1436 = vpop.f32.mrb[0].mxu0
    %v1437 = vadd.f32 0.0, %v1436
    %1438 = vdwg.mxu0
    %v1439 = vadd.f32 %v1435, %v457
    %v1440 = vadd.f32 %v1437, %v461
    %v1441 = vxor.u32 %v1439, 2147483648
    %v1442 = vxor.u32 %v1440, 2147483648
    %v1443 = vmul.f32 %v1441, 1.442695
    %v1444 = vpow.pop %v1443
    %v1445 = vmul.f32 %v1442, 1.442695
    %v1446 = vpow.pop %v1445
    %v1447 = vadd.f32 %v1444, 1.0
    %v1448 = vadd.f32 %v1446, 1.0
    %v1449 = vrcp.pop %v1447
    %v1450 = vmul.f32 1.0, %v1449
    %v1451 = vrcp.pop %v1448
    %v1452 = vmul.f32 1.0, %v1451
    %v1453 = vtanh.pop %v1440
    %v1454 = vmul.f32 %v1450, %v1265
    %v1455 = vmul.f32 %v1450, %v1453
    %1457 = vrot.lane.b32.xlu0 %v1455, 64
    %v1458 = vpop.permute.xlu0 %1457
    %v1460 = vadd.f32 %v1454, %v1458
    %v1461 = vtanh.pop %v1460
    %v1462 = vmul.f32 %v1452, %v1461
    %v1463 = vadd.f32 %v208, %v1364
    %v1464 = vadd.f32 %v210, %v1366
    %v1465 = vxor.u32 %v1463, 2147483648
    %v1466 = vxor.u32 %v1464, 2147483648
    %v1467 = vmul.f32 %v1465, 1.442695
    %v1468 = vpow.pop %v1467
    %v1469 = vmul.f32 %v1466, 1.442695
    %v1470 = vpow.pop %v1469
    %v1471 = vadd.f32 %v1468, 1.0
    %v1472 = vadd.f32 %v1470, 1.0
    %v1473 = vrcp.pop %v1471
    %v1474 = vmul.f32 1.0, %v1473
    %v1475 = vrcp.pop %v1472
    %v1476 = vmul.f32 1.0, %v1475
    %v1477 = vtanh.pop %v1464
    %v1478 = vmul.f32 %v1474, %v1289
    %v1479 = vmul.f32 %v1474, %v1477
    %1481 = vrot.lane.b32.xlu0 %v1479, 64
    %v1482 = vpop.permute.xlu0 %1481
    %v1484 = vadd.f32 %v1478, %v1482
    %v1485 = vtanh.pop %v1484
    %v1486 = vmul.f32 %v1476, %v1485
    %1488 = vrot.lane.b32.xlu0 %v1486, 64
    %v1489 = vpop.permute.xlu0 %1488
    %v1491 = vsel %vm245, %v1489, %v1462
    %1492 = vmatprep.subr.mxu0 %v248
    %1493 = vmatpush1.msra.mxu0 %v247
    %1494 = vmatprep.subr.mxu0 %v252
    %1495 = vmatpush1.msra.mxu0 %v251
    %1496 = vmatprep.subr.mxu0 %v256
    %1497 = vmatpush1.msra.mxu0 %v255
    %1498 = vmatprep.subr.mxu0 %v260
    %1499 = vmatpush1.msra.mxu0 %v259
    %1500 = vmatprep.subr.mxu0 %v264
    %1501 = vmatpush1.msra.mxu0 %v263
    %1502 = vmatprep.subr.mxu0 %v268
    %1503 = vmatpush1.msra.mxu0 %v267
    %1504 = vmatprep.subr.mxu0 %v272
    %1505 = vmatpush1.msra.mxu0 %v271
    %1506 = vmatprep.subr.mxu0 %v276
    %1507 = vmatpush1.msra.mxu0 %v275
    %1508 = vmatprep.subr.mxu0 %v280
    %1509 = vmatpush1.msra.mxu0 %v279
    %1510 = vmatprep.subr.mxu0 %v284
    %1511 = vmatpush1.msra.mxu0 %v283
    %1512 = vmatprep.subr.mxu0 %v288
    %1513 = vmatpush1.msra.mxu0 %v287
    %1514 = vmatprep.subr.mxu0 %v292
    %1515 = vmatpush1.msra.mxu0 %v291
    %1516 = vmatprep.subr.mxu0 %v296
    %1517 = vmatpush1.msra.mxu0 %v295
    %1518 = vmatprep.subr.mxu0 %v300
    %1519 = vmatpush1.msra.mxu0 %v299
    %1520 = vmatprep.subr.mxu0 %v304
    %1521 = vmatpush1.msra.mxu0 %v303
    %1522 = vmatprep.subr.mxu0 %v308
    %1523 = vmatpush1.msra.mxu0 %v307
    %1524 = vmatprep.subr.mxu0 0.0
    %1525 = vmatpush1.msra.mxu0 0.0
    %1526 = vmatprep.subr.mxu0 0.0
    %1527 = vmatpush1.msra.mxu0 0.0
    %1528 = vmatprep.subr.mxu0 0.0
    %1529 = vmatpush1.msra.mxu0 0.0
    %1530 = vmatprep.subr.mxu0 0.0
    %1531 = vmatpush1.msra.mxu0 0.0
    %1532 = vmatprep.subr.mxu0 0.0
    %1533 = vmatpush1.msra.mxu0 0.0
    %1534 = vmatprep.subr.mxu0 0.0
    %1535 = vmatpush1.msra.mxu0 0.0
    %1536 = vmatprep.subr.mxu0 0.0
    %1537 = vmatpush1.msra.mxu0 0.0
    %1538 = vmatprep.subr.mxu0 0.0
    %1539 = vmatpush1.msra.mxu0 0.0
    %1540 = vmatprep.subr.mxu0 0.0
    %1541 = vmatpush1.msra.mxu0 0.0
    %1542 = vmatprep.subr.mxu0 0.0
    %1543 = vmatpush1.msra.mxu0 0.0
    %1544 = vmatprep.subr.mxu0 0.0
    %1545 = vmatpush1.msra.mxu0 0.0
    %1546 = vmatprep.subr.mxu0 0.0
    %1547 = vmatpush1.msra.mxu0 0.0
    %1548 = vmatprep.subr.mxu0 0.0
    %1549 = vmatpush1.msra.mxu0 0.0
    %1550 = vmatprep.subr.mxu0 0.0
    %1551 = vmatpush1.msra.mxu0 0.0
    %1552 = vmatprep.subr.mxu0 0.0
    %1553 = vmatpush1.msra.mxu0 0.0
    %1554 = vmatprep.subr.mxu0 0.0
    %1555 = vmatpush1.msra.mxu0 0.0
    %1556 = vmatprep.mubr.f32.mxu0 0.0
    %1557 = vmatmul.mubr.f32.gmra.mrb[0].mxu0 %v1491
    %v1558 = vpop.f32.mrb[0].mxu0
    %v1559 = vadd.f32 0.0, %v1558
    %v1560 = vpop.f32.mrb[0].mxu0
    %v1561 = vadd.f32 0.0, %v1560
    %1562 = vdwg.mxu0
    %1563 = vmatprep.subr.mxu0 %v250
    %1564 = vmatpush1.msra.mxu0 %v249
    %1565 = vmatprep.subr.mxu0 %v254
    %1566 = vmatpush1.msra.mxu0 %v253
    %1567 = vmatprep.subr.mxu0 %v258
    %1568 = vmatpush1.msra.mxu0 %v257
    %1569 = vmatprep.subr.mxu0 %v262
    %1570 = vmatpush1.msra.mxu0 %v261
    %1571 = vmatprep.subr.mxu0 %v266
    %1572 = vmatpush1.msra.mxu0 %v265
    %1573 = vmatprep.subr.mxu0 %v270
    %1574 = vmatpush1.msra.mxu0 %v269
    %1575 = vmatprep.subr.mxu0 %v274
    %1576 = vmatpush1.msra.mxu0 %v273
    %1577 = vmatprep.subr.mxu0 %v278
    %1578 = vmatpush1.msra.mxu0 %v277
    %1579 = vmatprep.subr.mxu0 %v282
    %1580 = vmatpush1.msra.mxu0 %v281
    %1581 = vmatprep.subr.mxu0 %v286
    %1582 = vmatpush1.msra.mxu0 %v285
    %1583 = vmatprep.subr.mxu0 %v290
    %1584 = vmatpush1.msra.mxu0 %v289
    %1585 = vmatprep.subr.mxu0 %v294
    %1586 = vmatpush1.msra.mxu0 %v293
    %1587 = vmatprep.subr.mxu0 %v298
    %1588 = vmatpush1.msra.mxu0 %v297
    %1589 = vmatprep.subr.mxu0 %v302
    %1590 = vmatpush1.msra.mxu0 %v301
    %1591 = vmatprep.subr.mxu0 %v306
    %1592 = vmatpush1.msra.mxu0 %v305
    %1593 = vmatprep.subr.mxu0 %v310
    %1594 = vmatpush1.msra.mxu0 %v309
    %1595 = vmatprep.subr.mxu0 0.0
    %1596 = vmatpush1.msra.mxu0 0.0
    %1597 = vmatprep.subr.mxu0 0.0
    %1598 = vmatpush1.msra.mxu0 0.0
    %1599 = vmatprep.subr.mxu0 0.0
    %1600 = vmatpush1.msra.mxu0 0.0
    %1601 = vmatprep.subr.mxu0 0.0
    %1602 = vmatpush1.msra.mxu0 0.0
    %1603 = vmatprep.subr.mxu0 0.0
    %1604 = vmatpush1.msra.mxu0 0.0
    %1605 = vmatprep.subr.mxu0 0.0
    %1606 = vmatpush1.msra.mxu0 0.0
    %1607 = vmatprep.subr.mxu0 0.0
    %1608 = vmatpush1.msra.mxu0 0.0
    %1609 = vmatprep.subr.mxu0 0.0
    %1610 = vmatpush1.msra.mxu0 0.0
    %1611 = vmatprep.subr.mxu0 0.0
    %1612 = vmatpush1.msra.mxu0 0.0
    %1613 = vmatprep.subr.mxu0 0.0
    %1614 = vmatpush1.msra.mxu0 0.0
    %1615 = vmatprep.subr.mxu0 0.0
    %1616 = vmatpush1.msra.mxu0 0.0
    %1617 = vmatprep.subr.mxu0 0.0
    %1618 = vmatpush1.msra.mxu0 0.0
    %1619 = vmatprep.subr.mxu0 0.0
    %1620 = vmatpush1.msra.mxu0 0.0
    %1621 = vmatprep.subr.mxu0 0.0
    %1622 = vmatpush1.msra.mxu0 0.0
    %1623 = vmatprep.subr.mxu0 0.0
    %1624 = vmatpush1.msra.mxu0 0.0
    %1625 = vmatprep.subr.mxu0 0.0
    %1626 = vmatpush1.msra.mxu0 0.0
    %1627 = vmatprep.mubr.f32.mxu0 0.0
    %1628 = vmatmul.mubr.f32.gmra.mrb[0].mxu0 %v1491
    %v1629 = vpop.f32.mrb[0].mxu0
    %v1630 = vadd.f32 0.0, %v1629
    %v1631 = vpop.f32.mrb[0].mxu0
    %v1632 = vadd.f32 0.0, %v1631
    %1633 = vdwg.mxu0
    %v1634 = vadd.f32 %v1630, %v457
    %v1635 = vadd.f32 %v1632, %v461
    %v1636 = vxor.u32 %v1634, 2147483648
    %v1637 = vxor.u32 %v1635, 2147483648
    %v1638 = vmul.f32 %v1636, 1.442695
    %v1639 = vpow.pop %v1638
    %v1640 = vmul.f32 %v1637, 1.442695
    %v1641 = vpow.pop %v1640
    %v1642 = vadd.f32 %v1639, 1.0
    %v1643 = vadd.f32 %v1641, 1.0
    %v1644 = vrcp.pop %v1642
    %v1645 = vmul.f32 1.0, %v1644
    %v1646 = vrcp.pop %v1643
    %v1647 = vmul.f32 1.0, %v1646
    %v1648 = vtanh.pop %v1635
    %v1649 = vmul.f32 %v1645, %v1460
    %v1650 = vmul.f32 %v1645, %v1648
    %1652 = vrot.lane.b32.xlu0 %v1650, 64
    %v1653 = vpop.permute.xlu0 %1652
    %v1655 = vadd.f32 %v1649, %v1653
    %v1656 = vtanh.pop %v1655
    %v1657 = vmul.f32 %v1647, %v1656
    %v1658 = vadd.f32 %v214, %v1559
    %v1659 = vadd.f32 %v216, %v1561
    %v1660 = vxor.u32 %v1658, 2147483648
    %v1661 = vxor.u32 %v1659, 2147483648
    %v1662 = vmul.f32 %v1660, 1.442695
    %v1663 = vpow.pop %v1662
    %v1664 = vmul.f32 %v1661, 1.442695
    %v1665 = vpow.pop %v1664
    %v1666 = vadd.f32 %v1663, 1.0
    %v1667 = vadd.f32 %v1665, 1.0
    %v1668 = vrcp.pop %v1666
    %v1669 = vmul.f32 1.0, %v1668
    %v1670 = vrcp.pop %v1667
    %v1671 = vmul.f32 1.0, %v1670
    %v1672 = vtanh.pop %v1659
    %v1673 = vmul.f32 %v1669, %v1484
    %v1674 = vmul.f32 %v1669, %v1672
    %1676 = vrot.lane.b32.xlu0 %v1674, 64
    %v1677 = vpop.permute.xlu0 %1676
    %v1679 = vadd.f32 %v1673, %v1677
    %v1680 = vtanh.pop %v1679
    %v1681 = vmul.f32 %v1671, %v1680
    %1683 = vrot.lane.b32.xlu0 %v1681, 64
    %v1684 = vpop.permute.xlu0 %1683
    %v1686 = vsel %vm245, %v1684, %v1657
    %1687 = vmatprep.subr.mxu0 %v250
    %1688 = vmatpush1.msra.mxu0 %v249
    %1689 = vmatprep.subr.mxu0 %v254
    %1690 = vmatpush1.msra.mxu0 %v253
    %1691 = vmatprep.subr.mxu0 %v258
    %1692 = vmatpush1.msra.mxu0 %v257
    %1693 = vmatprep.subr.mxu0 %v262
    %1694 = vmatpush1.msra.mxu0 %v261
    %1695 = vmatprep.subr.mxu0 %v266
    %1696 = vmatpush1.msra.mxu0 %v265
    %1697 = vmatprep.subr.mxu0 %v270
    %1698 = vmatpush1.msra.mxu0 %v269
    %1699 = vmatprep.subr.mxu0 %v274
    %1700 = vmatpush1.msra.mxu0 %v273
    %1701 = vmatprep.subr.mxu0 %v278
    %1702 = vmatpush1.msra.mxu0 %v277
    %1703 = vmatprep.subr.mxu0 %v282
    %1704 = vmatpush1.msra.mxu0 %v281
    %1705 = vmatprep.subr.mxu0 %v286
    %1706 = vmatpush1.msra.mxu0 %v285
    %1707 = vmatprep.subr.mxu0 %v290
    %1708 = vmatpush1.msra.mxu0 %v289
    %1709 = vmatprep.subr.mxu0 %v294
    %1710 = vmatpush1.msra.mxu0 %v293
    %1711 = vmatprep.subr.mxu0 %v298
    %1712 = vmatpush1.msra.mxu0 %v297
    %1713 = vmatprep.subr.mxu0 %v302
    %1714 = vmatpush1.msra.mxu0 %v301
    %1715 = vmatprep.subr.mxu0 %v306
    %1716 = vmatpush1.msra.mxu0 %v305
    %1717 = vmatprep.subr.mxu0 %v310
    %1718 = vmatpush1.msra.mxu0 %v309
    %1719 = vmatprep.subr.mxu0 0.0
    %1720 = vmatpush1.msra.mxu0 0.0
    %1721 = vmatprep.subr.mxu0 0.0
    %1722 = vmatpush1.msra.mxu0 0.0
    %1723 = vmatprep.subr.mxu0 0.0
    %1724 = vmatpush1.msra.mxu0 0.0
    %1725 = vmatprep.subr.mxu0 0.0
    %1726 = vmatpush1.msra.mxu0 0.0
    %1727 = vmatprep.subr.mxu0 0.0
    %1728 = vmatpush1.msra.mxu0 0.0
    %1729 = vmatprep.subr.mxu0 0.0
    %1730 = vmatpush1.msra.mxu0 0.0
    %1731 = vmatprep.subr.mxu0 0.0
    %1732 = vmatpush1.msra.mxu0 0.0
    %1733 = vmatprep.subr.mxu0 0.0
    %1734 = vmatpush1.msra.mxu0 0.0
    %1735 = vmatprep.subr.mxu0 0.0
    %1736 = vmatpush1.msra.mxu0 0.0
    %1737 = vmatprep.subr.mxu0 0.0
    %1738 = vmatpush1.msra.mxu0 0.0
    %1739 = vmatprep.subr.mxu0 0.0
    %1740 = vmatpush1.msra.mxu0 0.0
    %1741 = vmatprep.subr.mxu0 0.0
    %1742 = vmatpush1.msra.mxu0 0.0
    %1743 = vmatprep.subr.mxu0 0.0
    %1744 = vmatpush1.msra.mxu0 0.0
    %1745 = vmatprep.subr.mxu0 0.0
    %1746 = vmatpush1.msra.mxu0 0.0
    %1747 = vmatprep.subr.mxu0 0.0
    %1748 = vmatpush1.msra.mxu0 0.0
    %1749 = vmatprep.subr.mxu0 0.0
    %1750 = vmatpush1.msra.mxu0 0.0
    %1751 = vmatprep.mubr.f32.mxu0 0.0
    %1752 = vmatmul.mubr.f32.gmra.mrb[0].mxu0 %v1686
    %v1753 = vpop.f32.mrb[0].mxu0
    %v1754 = vadd.f32 %v457, %v1753
    %v1755 = vpop.f32.mrb[0].mxu0
    %v1756 = vadd.f32 %v461, %v1755
    %1757 = vdwg.mxu0
    %v1758 = vxor.u32 %v1754, 2147483648
    %v1759 = vxor.u32 %v1756, 2147483648
    %v1760 = vmul.f32 %v1758, 1.442695
    %v1761 = vpow.pop %v1760
    %v1762 = vmul.f32 %v1759, 1.442695
    %v1763 = vpow.pop %v1762
    %v1764 = vadd.f32 %v1761, 1.0
    %v1765 = vadd.f32 %v1763, 1.0
    %v1766 = vrcp.pop %v1764
    %v1767 = vmul.f32 1.0, %v1766
    %v1768 = vrcp.pop %v1765
    %v1769 = vmul.f32 1.0, %v1768
    %v1770 = vtanh.pop %v1756
    %v1771 = vmul.f32 %v1767, %v1655
    %v1772 = vmul.f32 %v1767, %v1770
    %1774 = vrot.lane.b32.xlu0 %v1772, 64
    %v1775 = vpop.permute.xlu0 %1774
    %v1777 = vadd.f32 %v1771, %v1775
    %v1778 = vtanh.pop %v1777
    %v1779 = vmul.f32 %v1769, %v1778
    %v1780 = vld [vmem:[%s5] sm:$0xff]
    %v1781 = vld [vmem:[%s5 + $0x8] sm:$0xff]
    %v1782 = vld [vmem:[%s5 + $0x10] sm:$0xff]
    %v1783 = vld [vmem:[%s5 + $0x18] sm:$0xff]
    %v1784 = vld [vmem:[%s5 + $0x20] sm:$0xff]
    %v1785 = vld [vmem:[%s5 + $0x28] sm:$0xff]
    %v1786 = vld [vmem:[%s5 + $0x30] sm:$0xff]
    %v1787 = vld [vmem:[%s5 + $0x38] sm:$0xff]
    %v1788 = vld [vmem:[%s6] sm:$0x1]
    %v1790 = vlaneseq
    %v1791 = vshrl.u32 %v1790, 7
    %v1792 = vsub.s32 0, %v1791
    %v1793 = vrot.slane %v1788, %v1792
    %1803 = vrot.lane.b32.xlu0 %v487, 64
    %v1804 = vpop.permute.xlu0 %1803
    %1805 = vrot.lane.b32.xlu0 %v682, 64
    %v1806 = vpop.permute.xlu0 %1805
    %1807 = vrot.lane.b32.xlu0 %v877, 64
    %v1808 = vpop.permute.xlu0 %1807
    %1809 = vrot.lane.b32.xlu0 %v1072, 64
    %v1810 = vpop.permute.xlu0 %1809
    %1811 = vrot.lane.b32.xlu0 %v1267, 64
    %v1812 = vpop.permute.xlu0 %1811
    %1813 = vrot.lane.b32.xlu0 %v1462, 64
    %v1814 = vpop.permute.xlu0 %1813
    %1815 = vrot.lane.b32.xlu0 %v1657, 64
    %v1816 = vpop.permute.xlu0 %1815
    %1817 = vrot.lane.b32.xlu0 %v1779, 64
    %v1818 = vpop.permute.xlu0 %1817
    %v1819 = vsel %vm245, %v1804, 0
    %v1821 = vsel %vm245, %v1806, 0
    %v1823 = vsel %vm245, %v1808, 0
    %v1825 = vsel %vm245, %v1810, 0
    %v1827 = vsel %vm245, %v1812, 0
    %v1829 = vsel %vm245, %v1814, 0
    %v1831 = vsel %vm245, %v1816, 0
    %v1833 = vsel %vm245, %v1818, 0
    %1835 = vmatprep.subr.mxu0 0.0
    %1836 = vmatpush1.msra.mxu0 %v1780
    %1837 = vmatprep.subr.mxu0 0.0
    %1838 = vmatpush1.msra.mxu0 %v1781
    %1839 = vmatprep.subr.mxu0 0.0
    %1840 = vmatpush1.msra.mxu0 %v1782
    %1841 = vmatprep.subr.mxu0 0.0
    %1842 = vmatpush1.msra.mxu0 %v1783
    %1843 = vmatprep.subr.mxu0 0.0
    %1844 = vmatpush1.msra.mxu0 %v1784
    %1845 = vmatprep.subr.mxu0 0.0
    %1846 = vmatpush1.msra.mxu0 %v1785
    %1847 = vmatprep.subr.mxu0 0.0
    %1848 = vmatpush1.msra.mxu0 %v1786
    %1849 = vmatprep.subr.mxu0 0.0
    %1850 = vmatpush1.msra.mxu0 %v1787
    %1851 = vmatprep.subr.mxu0 0.0
    %1852 = vmatpush1.msra.mxu0 0.0
    %1853 = vmatprep.subr.mxu0 0.0
    %1854 = vmatpush1.msra.mxu0 0.0
    %1855 = vmatprep.subr.mxu0 0.0
    %1856 = vmatpush1.msra.mxu0 0.0
    %1857 = vmatprep.subr.mxu0 0.0
    %1858 = vmatpush1.msra.mxu0 0.0
    %1859 = vmatprep.subr.mxu0 0.0
    %1860 = vmatpush1.msra.mxu0 0.0
    %1861 = vmatprep.subr.mxu0 0.0
    %1862 = vmatpush1.msra.mxu0 0.0
    %1863 = vmatprep.subr.mxu0 0.0
    %1864 = vmatpush1.msra.mxu0 0.0
    %1865 = vmatprep.subr.mxu0 0.0
    %1866 = vmatpush1.msra.mxu0 0.0
    %1867 = vmatprep.subr.mxu0 0.0
    %1868 = vmatpush1.msra.mxu0 0.0
    %1869 = vmatprep.subr.mxu0 0.0
    %1870 = vmatpush1.msra.mxu0 0.0
    %1871 = vmatprep.subr.mxu0 0.0
    %1872 = vmatpush1.msra.mxu0 0.0
    %1873 = vmatprep.subr.mxu0 0.0
    %1874 = vmatpush1.msra.mxu0 0.0
    %1875 = vmatprep.subr.mxu0 0.0
    %1876 = vmatpush1.msra.mxu0 0.0
    %1877 = vmatprep.subr.mxu0 0.0
    %1878 = vmatpush1.msra.mxu0 0.0
    %1879 = vmatprep.subr.mxu0 0.0
    %1880 = vmatpush1.msra.mxu0 0.0
    %1881 = vmatprep.subr.mxu0 0.0
    %1882 = vmatpush1.msra.mxu0 0.0
    %1883 = vmatprep.subr.mxu0 0.0
    %1884 = vmatpush1.msra.mxu0 0.0
    %1885 = vmatprep.subr.mxu0 0.0
    %1886 = vmatpush1.msra.mxu0 0.0
    %1887 = vmatprep.subr.mxu0 0.0
    %1888 = vmatpush1.msra.mxu0 0.0
    %1889 = vmatprep.subr.mxu0 0.0
    %1890 = vmatpush1.msra.mxu0 0.0
    %1891 = vmatprep.subr.mxu0 0.0
    %1892 = vmatpush1.msra.mxu0 0.0
    %1893 = vmatprep.subr.mxu0 0.0
    %1894 = vmatpush1.msra.mxu0 0.0
    %1895 = vmatprep.subr.mxu0 0.0
    %1896 = vmatpush1.msra.mxu0 0.0
    %1897 = vmatprep.subr.mxu0 0.0
    %1898 = vmatpush1.msra.mxu0 0.0
    %1899 = vmatprep.mubr.f32.mxu0 0.0
    %1900 = vmatmul.mubr.f32.gmra.mrb[0].mxu0 %v1819
    %v1901 = vpop.f32.mrb[0].mxu0
    %v1902 = vadd.f32 %v1793, %v1901
    %v1903 = vpop.f32.mrb[0].mxu0
    %1904 = vmatprep.mubr.f32.mxu0 0.0
    %1905 = vmatmul.mubr.f32.gmra.mrb[0].mxu0 %v1821
    %v1906 = vpop.f32.mrb[0].mxu0
    %v1907 = vadd.f32 %v1793, %v1906
    %v1908 = vpop.f32.mrb[0].mxu0
    %1909 = vmatprep.mubr.f32.mxu0 0.0
    %1910 = vmatmul.mubr.f32.gmra.mrb[0].mxu0 %v1823
    %v1911 = vpop.f32.mrb[0].mxu0
    %v1912 = vadd.f32 %v1793, %v1911
    %v1913 = vpop.f32.mrb[0].mxu0
    %1914 = vmatprep.mubr.f32.mxu0 0.0
    %1915 = vmatmul.mubr.f32.gmra.mrb[0].mxu0 %v1825
    %v1916 = vpop.f32.mrb[0].mxu0
    %v1917 = vadd.f32 %v1793, %v1916
    %v1918 = vpop.f32.mrb[0].mxu0
    %1919 = vmatprep.mubr.f32.mxu0 0.0
    %1920 = vmatmul.mubr.f32.gmra.mrb[0].mxu0 %v1827
    %v1921 = vpop.f32.mrb[0].mxu0
    %v1922 = vadd.f32 %v1793, %v1921
    %v1923 = vpop.f32.mrb[0].mxu0
    %1924 = vmatprep.mubr.f32.mxu0 0.0
    %1925 = vmatmul.mubr.f32.gmra.mrb[0].mxu0 %v1829
    %v1926 = vpop.f32.mrb[0].mxu0
    %v1927 = vadd.f32 %v1793, %v1926
    %v1928 = vpop.f32.mrb[0].mxu0
    %1929 = vmatprep.mubr.f32.mxu0 0.0
    %1930 = vmatmul.mubr.f32.gmra.mrb[0].mxu0 %v1831
    %v1931 = vpop.f32.mrb[0].mxu0
    %v1932 = vadd.f32 %v1793, %v1931
    %v1933 = vpop.f32.mrb[0].mxu0
    %1934 = vmatprep.mubr.f32.mxu0 0.0
    %1935 = vmatmul.mubr.f32.gmra.mrb[0].mxu0 %v1833
    %v1936 = vpop.f32.mrb[0].mxu0
    %v1937 = vadd.f32 %v1793, %v1936
    %v1938 = vpop.f32.mrb[0].mxu0
    %1939 = vdwg.mxu0
    %v1940 = vtanh.pop %v1902
    %v1941 = vtanh.pop %v1907
    %v1942 = vtanh.pop %v1912
    %v1943 = vtanh.pop %v1917
    %v1944 = vtanh.pop %v1922
    %v1945 = vtanh.pop %v1927
    %v1946 = vtanh.pop %v1932
    %v1947 = vtanh.pop %v1937
    %v1948 = vld [vmem:[%s7] sm:$0xff]
    %v1949 = vld [vmem:[%s7 + $0x8] sm:$0xff]
    %v1950 = vld [vmem:[%s7 + $0x10] sm:$0xff]
    %v1951 = vld [vmem:[%s7 + $0x18] sm:$0xff]
    %v1952 = vld [vmem:[%s7 + $0x20] sm:$0xff]
    %v1953 = vld [vmem:[%s7 + $0x28] sm:$0xff]
    %v1954 = vld [vmem:[%s7 + $0x30] sm:$0xff]
    %v1955 = vld [vmem:[%s7 + $0x38] sm:$0xff]
    %v1956 = vld [vmem:[%s7 + $0x40] sm:$0xff]
    %v1957 = vld [vmem:[%s7 + $0x48] sm:$0xff]
    %v1958 = vld [vmem:[%s7 + $0x50] sm:$0xff]
    %v1959 = vld [vmem:[%s7 + $0x58] sm:$0xff]
    %v1960 = vld [vmem:[%s7 + $0x60] sm:$0xff]
    %v1961 = vld [vmem:[%s7 + $0x68] sm:$0xff]
    %v1962 = vld [vmem:[%s7 + $0x70] sm:$0xff]
    %v1963 = vld [vmem:[%s7 + $0x78] sm:$0xff]
    %v1964 = vld [vmem:[%s8] sm:$0x1]
    %v1966 = vlaneseq
    %v1967 = vshrl.u32 %v1966, 7
    %v1968 = vsub.s32 0, %v1967
    %v1969 = vrot.slane %v1964, %v1968
    %1971 = vmatprep.subr.mxu0 0.0
    %1972 = vmatpush1.msra.mxu0 %v1948
    %1973 = vmatprep.subr.mxu0 0.0
    %1974 = vmatpush1.msra.mxu0 %v1949
    %1975 = vmatprep.subr.mxu0 0.0
    %1976 = vmatpush1.msra.mxu0 %v1950
    %1977 = vmatprep.subr.mxu0 0.0
    %1978 = vmatpush1.msra.mxu0 %v1951
    %1979 = vmatprep.subr.mxu0 0.0
    %1980 = vmatpush1.msra.mxu0 %v1952
    %1981 = vmatprep.subr.mxu0 0.0
    %1982 = vmatpush1.msra.mxu0 %v1953
    %1983 = vmatprep.subr.mxu0 0.0
    %1984 = vmatpush1.msra.mxu0 %v1954
    %1985 = vmatprep.subr.mxu0 0.0
    %1986 = vmatpush1.msra.mxu0 %v1955
    %1987 = vmatprep.subr.mxu0 0.0
    %1988 = vmatpush1.msra.mxu0 %v1956
    %1989 = vmatprep.subr.mxu0 0.0
    %1990 = vmatpush1.msra.mxu0 %v1957
    %1991 = vmatprep.subr.mxu0 0.0
    %1992 = vmatpush1.msra.mxu0 %v1958
    %1993 = vmatprep.subr.mxu0 0.0
    %1994 = vmatpush1.msra.mxu0 %v1959
    %1995 = vmatprep.subr.mxu0 0.0
    %1996 = vmatpush1.msra.mxu0 %v1960
    %1997 = vmatprep.subr.mxu0 0.0
    %1998 = vmatpush1.msra.mxu0 %v1961
    %1999 = vmatprep.subr.mxu0 0.0
    %2000 = vmatpush1.msra.mxu0 %v1962
    %2001 = vmatprep.subr.mxu0 0.0
    %2002 = vmatpush1.msra.mxu0 %v1963
    %2003 = vmatprep.subr.mxu0 0.0
    %2004 = vmatpush1.msra.mxu0 0.0
    %2005 = vmatprep.subr.mxu0 0.0
    %2006 = vmatpush1.msra.mxu0 0.0
    %2007 = vmatprep.subr.mxu0 0.0
    %2008 = vmatpush1.msra.mxu0 0.0
    %2009 = vmatprep.subr.mxu0 0.0
    %2010 = vmatpush1.msra.mxu0 0.0
    %2011 = vmatprep.subr.mxu0 0.0
    %2012 = vmatpush1.msra.mxu0 0.0
    %2013 = vmatprep.subr.mxu0 0.0
    %2014 = vmatpush1.msra.mxu0 0.0
    %2015 = vmatprep.subr.mxu0 0.0
    %2016 = vmatpush1.msra.mxu0 0.0
    %2017 = vmatprep.subr.mxu0 0.0
    %2018 = vmatpush1.msra.mxu0 0.0
    %2019 = vmatprep.subr.mxu0 0.0
    %2020 = vmatpush1.msra.mxu0 0.0
    %2021 = vmatprep.subr.mxu0 0.0
    %2022 = vmatpush1.msra.mxu0 0.0
    %2023 = vmatprep.subr.mxu0 0.0
    %2024 = vmatpush1.msra.mxu0 0.0
    %2025 = vmatprep.subr.mxu0 0.0
    %2026 = vmatpush1.msra.mxu0 0.0
    %2027 = vmatprep.subr.mxu0 0.0
    %2028 = vmatpush1.msra.mxu0 0.0
    %2029 = vmatprep.subr.mxu0 0.0
    %2030 = vmatpush1.msra.mxu0 0.0
    %2031 = vmatprep.subr.mxu0 0.0
    %2032 = vmatpush1.msra.mxu0 0.0
    %2033 = vmatprep.subr.mxu0 0.0
    %2034 = vmatpush1.msra.mxu0 0.0
    %2035 = vmatprep.mubr.f32.mxu0 0.0
    %2036 = vmatmul.mubr.f32.gmra.mrb[0].mxu0 %v1940
    %v2037 = vpop.f32.mrb[0].mxu0
    %v2038 = vadd.f32 %v1969, %v2037
    %v2039 = vpop.f32.mrb[0].mxu0
    %2040 = vmatprep.mubr.f32.mxu0 0.0
    %2041 = vmatmul.mubr.f32.gmra.mrb[0].mxu0 %v1941
    %v2042 = vpop.f32.mrb[0].mxu0
    %v2043 = vadd.f32 %v1969, %v2042
    %v2044 = vpop.f32.mrb[0].mxu0
    %2045 = vmatprep.mubr.f32.mxu0 0.0
    %2046 = vmatmul.mubr.f32.gmra.mrb[0].mxu0 %v1942
    %v2047 = vpop.f32.mrb[0].mxu0
    %v2048 = vadd.f32 %v1969, %v2047
    %v2049 = vpop.f32.mrb[0].mxu0
    %2050 = vmatprep.mubr.f32.mxu0 0.0
    %2051 = vmatmul.mubr.f32.gmra.mrb[0].mxu0 %v1943
    %v2052 = vpop.f32.mrb[0].mxu0
    %v2053 = vadd.f32 %v1969, %v2052
    %v2054 = vpop.f32.mrb[0].mxu0
    %2055 = vmatprep.mubr.f32.mxu0 0.0
    %2056 = vmatmul.mubr.f32.gmra.mrb[0].mxu0 %v1944
    %v2057 = vpop.f32.mrb[0].mxu0
    %v2058 = vadd.f32 %v1969, %v2057
    %v2059 = vpop.f32.mrb[0].mxu0
    %2060 = vmatprep.mubr.f32.mxu0 0.0
    %2061 = vmatmul.mubr.f32.gmra.mrb[0].mxu0 %v1945
    %v2062 = vpop.f32.mrb[0].mxu0
    %v2063 = vadd.f32 %v1969, %v2062
    %v2064 = vpop.f32.mrb[0].mxu0
    %2065 = vmatprep.mubr.f32.mxu0 0.0
    %2066 = vmatmul.mubr.f32.gmra.mrb[0].mxu0 %v1946
    %v2067 = vpop.f32.mrb[0].mxu0
    %v2068 = vadd.f32 %v1969, %v2067
    %v2069 = vpop.f32.mrb[0].mxu0
    %2070 = vmatprep.mubr.f32.mxu0 0.0
    %2071 = vmatmul.mubr.f32.gmra.mrb[0].mxu0 %v1947
    %v2072 = vpop.f32.mrb[0].mxu0
    %v2073 = vadd.f32 %v1969, %v2072
    %v2074 = vpop.f32.mrb[0].mxu0
    %2075 = vdwg.mxu0
    %v2076 = vtanh.pop %v2038
    %v2077 = vtanh.pop %v2043
    %v2078 = vtanh.pop %v2048
    %v2079 = vtanh.pop %v2053
    %v2080 = vtanh.pop %v2058
    %v2081 = vtanh.pop %v2063
    %v2082 = vtanh.pop %v2068
    %v2083 = vtanh.pop %v2073
    %v2085 = vadd.f32 %v2076, %v1818
    %v2086 = vadd.f32 %v2077, %v1818
    %v2087 = vadd.f32 %v2078, %v1818
    %v2088 = vadd.f32 %v2079, %v1818
    %v2089 = vadd.f32 %v2080, %v1818
    %v2090 = vadd.f32 %v2081, %v1818
    %v2091 = vadd.f32 %v2082, %v1818
    %v2092 = vadd.f32 %v2083, %v1818
    %v2093 = vld [vmem:[%s9] sm:$0xff]
    %v2094 = vld [vmem:[%s9 + $0x8] sm:$0xff]
    %v2095 = vld [vmem:[%s9 + $0x10] sm:$0xff]
    %v2096 = vld [vmem:[%s9 + $0x18] sm:$0xff]
    %v2097 = vld [vmem:[%s9 + $0x20] sm:$0xff]
    %v2098 = vld [vmem:[%s9 + $0x28] sm:$0xff]
    %v2099 = vld [vmem:[%s9 + $0x30] sm:$0xff]
    %v2100 = vld [vmem:[%s9 + $0x38] sm:$0xff]
    %v2101 = vld [vmem:[%s10] sm:$0x1]
    %v2103 = vlaneseq
    %v2104 = vshrl.u32 %v2103, 7
    %v2105 = vsub.s32 0, %v2104
    %v2106 = vrot.slane %v2101, %v2105
    %v2109 = vsel %vm245, %v2085, 0
    %v2112 = vsel %vm245, %v2086, 0
    %v2115 = vsel %vm245, %v2087, 0
    %v2118 = vsel %vm245, %v2088, 0
    %v2121 = vsel %vm245, %v2089, 0
    %v2124 = vsel %vm245, %v2090, 0
    %v2127 = vsel %vm245, %v2091, 0
    %v2130 = vsel %vm245, %v2092, 0
    %2132 = vmatprep.subr.mxu0 0.0
    %2133 = vmatpush1.msra.mxu0 %v2093
    %2134 = vmatprep.subr.mxu0 0.0
    %2135 = vmatpush1.msra.mxu0 %v2094
    %2136 = vmatprep.subr.mxu0 0.0
    %2137 = vmatpush1.msra.mxu0 %v2095
    %2138 = vmatprep.subr.mxu0 0.0
    %2139 = vmatpush1.msra.mxu0 %v2096
    %2140 = vmatprep.subr.mxu0 0.0
    %2141 = vmatpush1.msra.mxu0 %v2097
    %2142 = vmatprep.subr.mxu0 0.0
    %2143 = vmatpush1.msra.mxu0 %v2098
    %2144 = vmatprep.subr.mxu0 0.0
    %2145 = vmatpush1.msra.mxu0 %v2099
    %2146 = vmatprep.subr.mxu0 0.0
    %2147 = vmatpush1.msra.mxu0 %v2100
    %2148 = vmatprep.subr.mxu0 0.0
    %2149 = vmatpush1.msra.mxu0 0.0
    %2150 = vmatprep.subr.mxu0 0.0
    %2151 = vmatpush1.msra.mxu0 0.0
    %2152 = vmatprep.subr.mxu0 0.0
    %2153 = vmatpush1.msra.mxu0 0.0
    %2154 = vmatprep.subr.mxu0 0.0
    %2155 = vmatpush1.msra.mxu0 0.0
    %2156 = vmatprep.subr.mxu0 0.0
    %2157 = vmatpush1.msra.mxu0 0.0
    %2158 = vmatprep.subr.mxu0 0.0
    %2159 = vmatpush1.msra.mxu0 0.0
    %2160 = vmatprep.subr.mxu0 0.0
    %2161 = vmatpush1.msra.mxu0 0.0
    %2162 = vmatprep.subr.mxu0 0.0
    %2163 = vmatpush1.msra.mxu0 0.0
    %2164 = vmatprep.subr.mxu0 0.0
    %2165 = vmatpush1.msra.mxu0 0.0
    %2166 = vmatprep.subr.mxu0 0.0
    %2167 = vmatpush1.msra.mxu0 0.0
    %2168 = vmatprep.subr.mxu0 0.0
    %2169 = vmatpush1.msra.mxu0 0.0
    %2170 = vmatprep.subr.mxu0 0.0
    %2171 = vmatpush1.msra.mxu0 0.0
    %2172 = vmatprep.subr.mxu0 0.0
    %2173 = vmatpush1.msra.mxu0 0.0
    %2174 = vmatprep.subr.mxu0 0.0
    %2175 = vmatpush1.msra.mxu0 0.0
    %2176 = vmatprep.subr.mxu0 0.0
    %2177 = vmatpush1.msra.mxu0 0.0
    %2178 = vmatprep.subr.mxu0 0.0
    %2179 = vmatpush1.msra.mxu0 0.0
    %2180 = vmatprep.subr.mxu0 0.0
    %2181 = vmatpush1.msra.mxu0 0.0
    %2182 = vmatprep.subr.mxu0 0.0
    %2183 = vmatpush1.msra.mxu0 0.0
    %2184 = vmatprep.subr.mxu0 0.0
    %2185 = vmatpush1.msra.mxu0 0.0
    %2186 = vmatprep.subr.mxu0 0.0
    %2187 = vmatpush1.msra.mxu0 0.0
    %2188 = vmatprep.subr.mxu0 0.0
    %2189 = vmatpush1.msra.mxu0 0.0
    %2190 = vmatprep.subr.mxu0 0.0
    %2191 = vmatpush1.msra.mxu0 0.0
    %2192 = vmatprep.subr.mxu0 0.0
    %2193 = vmatpush1.msra.mxu0 0.0
    %2194 = vmatprep.subr.mxu0 0.0
    %2195 = vmatpush1.msra.mxu0 0.0
    %2196 = vmatprep.mubr.f32.mxu0 0.0
    %2197 = vmatmul.mubr.f32.gmra.mrb[0].mxu0 %v2109
    %v2198 = vpop.f32.mrb[0].mxu0
    %v2199 = vadd.f32 %v2106, %v2198
    %v2200 = vpop.f32.mrb[0].mxu0
    %2201 = vmatprep.mubr.f32.mxu0 0.0
    %2202 = vmatmul.mubr.f32.gmra.mrb[0].mxu0 %v2112
    %v2203 = vpop.f32.mrb[0].mxu0
    %v2204 = vadd.f32 %v2106, %v2203
    %v2205 = vpop.f32.mrb[0].mxu0
    %2206 = vmatprep.mubr.f32.mxu0 0.0
    %2207 = vmatmul.mubr.f32.gmra.mrb[0].mxu0 %v2115
    %v2208 = vpop.f32.mrb[0].mxu0
    %v2209 = vadd.f32 %v2106, %v2208
    %v2210 = vpop.f32.mrb[0].mxu0
    %2211 = vmatprep.mubr.f32.mxu0 0.0
    %2212 = vmatmul.mubr.f32.gmra.mrb[0].mxu0 %v2118
    %v2213 = vpop.f32.mrb[0].mxu0
    %v2214 = vadd.f32 %v2106, %v2213
    %v2215 = vpop.f32.mrb[0].mxu0
    %2216 = vmatprep.mubr.f32.mxu0 0.0
    %2217 = vmatmul.mubr.f32.gmra.mrb[0].mxu0 %v2121
    %v2218 = vpop.f32.mrb[0].mxu0
    %v2219 = vadd.f32 %v2106, %v2218
    %v2220 = vpop.f32.mrb[0].mxu0
    %2221 = vmatprep.mubr.f32.mxu0 0.0
    %2222 = vmatmul.mubr.f32.gmra.mrb[0].mxu0 %v2124
    %v2223 = vpop.f32.mrb[0].mxu0
    %v2224 = vadd.f32 %v2106, %v2223
    %v2225 = vpop.f32.mrb[0].mxu0
    %2226 = vmatprep.mubr.f32.mxu0 0.0
    %2227 = vmatmul.mubr.f32.gmra.mrb[0].mxu0 %v2127
    %v2228 = vpop.f32.mrb[0].mxu0
    %v2229 = vadd.f32 %v2106, %v2228
    %v2230 = vpop.f32.mrb[0].mxu0
    %2231 = vmatprep.mubr.f32.mxu0 0.0
    %2232 = vmatmul.mubr.f32.gmra.mrb[0].mxu0 %v2130
    %v2233 = vpop.f32.mrb[0].mxu0
    %v2234 = vadd.f32 %v2106, %v2233
    %v2235 = vpop.f32.mrb[0].mxu0
    %2236 = vdwg.mxu0
    %v2237 = vxor.u32 %v2199, 2147483648
    %v2238 = vxor.u32 %v2204, 2147483648
    %v2239 = vxor.u32 %v2209, 2147483648
    %v2240 = vxor.u32 %v2214, 2147483648
    %v2241 = vxor.u32 %v2219, 2147483648
    %v2242 = vxor.u32 %v2224, 2147483648
    %v2243 = vxor.u32 %v2229, 2147483648
    %v2244 = vxor.u32 %v2234, 2147483648
    %v2245 = vmul.f32 %v2237, 1.442695
    %v2246 = vpow.pop %v2245
    %v2247 = vmul.f32 %v2238, 1.442695
    %v2248 = vpow.pop %v2247
    %v2249 = vmul.f32 %v2239, 1.442695
    %v2250 = vpow.pop %v2249
    %v2251 = vmul.f32 %v2240, 1.442695
    %v2252 = vpow.pop %v2251
    %v2253 = vmul.f32 %v2241, 1.442695
    %v2254 = vpow.pop %v2253
    %v2255 = vmul.f32 %v2242, 1.442695
    %v2256 = vpow.pop %v2255
    %v2257 = vmul.f32 %v2243, 1.442695
    %v2258 = vpow.pop %v2257
    %v2259 = vmul.f32 %v2244, 1.442695
    %v2260 = vpow.pop %v2259
    %v2261 = vadd.f32 %v2246, 1.0
    %v2262 = vadd.f32 %v2248, 1.0
    %v2263 = vadd.f32 %v2250, 1.0
    %v2264 = vadd.f32 %v2252, 1.0
    %v2265 = vadd.f32 %v2254, 1.0
    %v2266 = vadd.f32 %v2256, 1.0
    %v2267 = vadd.f32 %v2258, 1.0
    %v2268 = vadd.f32 %v2260, 1.0
    %v2269 = vrcp.pop %v2261
    %v2270 = vmul.f32 1.0, %v2269
    %v2271 = vrcp.pop %v2262
    %v2272 = vmul.f32 1.0, %v2271
    %v2273 = vrcp.pop %v2263
    %v2274 = vmul.f32 1.0, %v2273
    %v2275 = vrcp.pop %v2264
    %v2276 = vmul.f32 1.0, %v2275
    %v2277 = vrcp.pop %v2265
    %v2278 = vmul.f32 1.0, %v2277
    %v2279 = vrcp.pop %v2266
    %v2280 = vmul.f32 1.0, %v2279
    %v2281 = vrcp.pop %v2267
    %v2282 = vmul.f32 1.0, %v2281
    %v2283 = vrcp.pop %v2268
    %v2284 = vmul.f32 1.0, %v2283
    %2285 = vst.msk [vmem:[%s11] sm:$0xff] %vm245, %v2270
    %2286 = vst.msk [vmem:[%s11 + $0x8] sm:$0xff] %vm245, %v2272
    %2287 = vst.msk [vmem:[%s11 + $0x10] sm:$0xff] %vm245, %v2274
    %2288 = vst.msk [vmem:[%s11 + $0x18] sm:$0xff] %vm245, %v2276
    %2289 = vst.msk [vmem:[%s11 + $0x20] sm:$0xff] %vm245, %v2278
    %2290 = vst.msk [vmem:[%s11 + $0x28] sm:$0xff] %vm245, %v2280
    %2291 = vst.msk [vmem:[%s11 + $0x30] sm:$0xff] %vm245, %v2282
    %2292 = vst.msk [vmem:[%s11 + $0x38] sm:$0xff] %vm245, %v2284
    // Predicated region
    $region50: #{dkt_f_forward.1} parent=1 // pred_check
      _
    $region51: #{dkt_f_forward.1} parent=1 // pred_check_branch
      %2294 = sbr.rel (0) target = $region53
    $region52: #{dkt_f_forward.1} parent=1 // pred_region
      _
    $region53: #{dkt_f_forward.1} parent=1 // pred_fallthru
      _
    // Predicated region
    $region54: #{dkt_f_forward.1} parent=1 // pred_check
      _
    $region55: #{dkt_f_forward.1} parent=1 // pred_check_branch
      %2296 = sbr.rel (0) target = $region57
    $region56: #{dkt_f_forward.1} parent=1 // pred_region
      _
    $region57: #{dkt_f_forward.1} parent=1 // pred_fallthru
      _
    %2297 = vsyncpa [#allocation3], 1

</llo_original>
